<compile_context>
chip_gen: v7x
topology: tpu7x:2x2x1
jax: 0.10.0
libtpu: 0.0.40
codegen_flags: <defaults>
</compile_context>

<pallas_src>
import math
from functools import partial

import jax
import jax.numpy as jnp
from jax.experimental import pallas as pl
from jax.experimental.pallas import tpu as pltpu

BN_EPS = 0.001
IMAGE_SIZE = 32


def _round_up(x, m):
    return ((x + m - 1) // m) * m


def _same_padding(kh, kw, sh, sw, image_size):
    """Replicates ManualConv2dPad's static 'same' padding.

    NOTE: like the PyTorch module, this is derived from the static image_size (default 32),
    not from the actual input H/W. For the tested K=3 / stride=1 case they coincide.
    """
    if isinstance(image_size, (list, tuple)):
        ih, iw = image_size[0], image_size[1]
    else:
        ih = iw = image_size
    oh, ow = math.ceil(ih / sh), math.ceil(iw / sw)
    pad_h = max((oh - 1) * sh + (kh - 1) + 1 - ih, 0)
    pad_w = max((ow - 1) * sw + (kw - 1) + 1 - iw, 0)
    return pad_h // 2, pad_h - pad_h // 2, pad_w // 2, pad_w - pad_w // 2


def _conv_bn_act_kernel(x_ref, w_ref, shift_ref, o_ref, *, taps, act_type):
    """One grid step = one image (direct conv + folded BN + activation).

    x_ref:     (1, C_in, S_in)    padded image, spatial dims flattened into the lane dim
    w_ref:     (KK, C_out, C_in)  per-tap weights with the BN scale already folded in
    shift_ref: (C_out, 1)         fused conv-bias + BN shift (broadcast over lanes)
    o_ref:     (1, C_out, L)      stride-1 output rows; L is a multiple of 128 (lane-dense)
    """
    L = o_ref.shape[-1]

    # Direct conv: KH*KW shifted, C_in-contracted matmuls accumulated in f32.
    # All slice offsets are static Python ints; the MXU N dim is L (>= 128).
    acc = None
    for k, off in enumerate(taps):
        contrib = jnp.dot(w_ref[k], x_ref[0, :, off:off + L],
                          preferred_element_type=jnp.float32)
        acc = contrib if acc is None else acc + contrib

    y = acc + shift_ref[...]                       # conv bias + BN affine (scale folded into W)
    if act_type == "swish":
        # sigmoid(x) = 0.5*tanh(x/2) + 0.5 -> a single EUP op per element, no overflow.
        y = y * (0.5 * jnp.tanh(0.5 * y) + 0.5)
    elif act_type == "relu":
        y = jnp.maximum(y, 0.0)
    elif act_type == "relu6":
        y = jnp.clip(y, 0.0, 6.0)
    elif act_type == "lrelu":
        y = jnp.where(y >= 0.0, y, 0.01 * y)
    elif act_type == "none":
        pass
    else:
        raise NotImplementedError(f"act_type={act_type}")

    o_ref[0] = y.astype(o_ref.dtype)


def conv_bn_acti(x, weight, conv_bias, gamma, beta, running_mean, running_var, *,
                 stride=1, eps=BN_EPS, image_size=IMAGE_SIZE, act_type="swish",
                 compute_dtype=jnp.float32):
    """Forward pass of ConvBNActi (inference-mode BN), NCHW in / NCHW out.

    compute_dtype: MXU operand dtype (use jnp.bfloat16 on v6e/v7x); accumulation stays f32.
    """
    N, C_in, H, W = x.shape
    C_out, _, KH, KW = weight.shape
    sh = sw = int(stride)

    # --- static same-padding, per ManualConv2dPad (derived from image_size) ---
    ph0, ph1, pw0, pw1 = _same_padding(KH, KW, sh, sw, image_size)
    Hp, Wp = H + ph0 + ph1, W + pw0 + pw1
    Ho = (Hp - KH) // sh + 1            # strided conv output size
    Wo = (Wp - KW) // sw + 1

    # The kernel always computes the stride-1 output grid over the padded image
    # (lane position q = h*Wp + w). The wrapper subsamples for stride > 1.
    Ho1 = Hp - KH + 1
    L1 = Ho1 * Wp                       # natural stride-1 row width (incl. Wp-Wo spill columns)
    L = _round_up(L1, 128)              # lane-dense output: unmasked stores, full-lane epilogue

    # Pad enough extra rows so every in-kernel tap slice [off, off + L) stays in bounds.
    need = (KH - 1) * Wp + (KW - 1) + L
    extra_rows = max(0, -(-(need - Hp * Wp) // Wp))
    x_pad = jnp.pad(x, ((0, 0), (0, 0), (ph0, ph1 + extra_rows), (pw0, pw1)))
    S_in = (Hp + extra_rows) * Wp
    x_flat = x_pad.reshape(N, C_in, S_in).astype(compute_dtype)   # free reshape; read ONCE by kernel

    # --- fold conv bias + BN(inference) into per-channel scale/shift; scale goes into W ---
    if conv_bias is None:
        conv_bias = jnp.zeros((C_out,), jnp.float32)
    inv_std = jax.lax.rsqrt(running_var.astype(jnp.float32) + eps)
    scale = gamma.astype(jnp.float32) * inv_std
    shift = (conv_bias.astype(jnp.float32) - running_mean.astype(jnp.float32)) * scale \
        + beta.astype(jnp.float32)
    w_taps = (jnp.transpose(weight, (2, 3, 0, 1)).reshape(KH * KW, C_out, C_in)
              .astype(jnp.float32) * scale[None, :, None]).astype(compute_dtype)
    shift2d = shift.reshape(C_out, 1)

    taps = tuple(kh * Wp + kw for kh in range(KH) for kw in range(KW))

    out_flat = pl.pallas_call(
        partial(_conv_bn_act_kernel, taps=taps, act_type=act_type),
        out_shape=jax.ShapeDtypeStruct((N, C_out, L), x.dtype),
        grid_spec=pltpu.PrefetchScalarGridSpec(
            num_scalar_prefetch=0,
            grid=(N,),                                   # >=2 parallel steps -> both v7x TCs busy
            in_specs=[
                pl.BlockSpec((1, C_in, S_in), lambda n: (n, 0, 0)),
                pl.BlockSpec((KH * KW, C_out, C_in), lambda n: (0, 0, 0)),
                pl.BlockSpec((C_out, 1), lambda n: (0, 0)),
            ],
            out_specs=pl.BlockSpec((1, C_out, L), lambda n: (n, 0, 0)),
        ),
        compiler_params=pltpu.CompilerParams(
            dimension_semantics=("parallel",),
            vmem_limit_bytes=32 * 1024 * 1024),
    )(x_flat, w_taps, shift2d)

    # Output is already channel-major: only a small slice (drop spill columns / stride
    # subsample); no transpose.
    out = out_flat[:, :, :L1].reshape(N, C_out, Ho1, Wp)
    out = out[:, :, ::sh, ::sw][:, :, :Ho, :Wo]
    return out


if __name__ == "__main__":
    key = jax.random.PRNGKey(0)
    k1, k2, k3, k4, k5, k6, k7 = jax.random.split(key, 7)

    # ConvBNActi(max_in_channels=4, max_out_channels=8, max_kernel_size=3,
    #            stride=1, bias=True, affine=True, act_type='swish')
    N, C_in, H, W = 2, 4, 16, 16
    C_out, K = 8, 3
    stride = 1

    x = jax.random.normal(k1, (N, C_in, H, W), dtype=jnp.float32)
    weight = 0.1 * jax.random.normal(k2, (C_out, C_in, K, K), dtype=jnp.float32)
    conv_bias = 0.1 * jax.random.normal(k3, (C_out,), dtype=jnp.float32)
    gamma = 1.0 + 0.1 * jax.random.normal(k4, (C_out,), dtype=jnp.float32)
    beta = 0.1 * jax.random.normal(k5, (C_out,), dtype=jnp.float32)
    running_mean = 0.1 * jax.random.normal(k6, (C_out,), dtype=jnp.float32)
    running_var = jnp.abs(1.0 + 0.1 * jax.random.normal(k7, (C_out,), dtype=jnp.float32))

    y = conv_bn_acti(x, weight, conv_bias, gamma, beta, running_mean, running_var,
                     stride=stride, act_type="swish")
    jax.block_until_ready(y)

    # ---------- plain-JAX reference ----------
    ph0, ph1, pw0, pw1 = _same_padding(K, K, stride, stride, IMAGE_SIZE)
    x_ref_pad = jnp.pad(x, ((0, 0), (0, 0), (ph0, ph1), (pw0, pw1)))
    y_conv = jax.lax.conv_general_dilated(
        x_ref_pad, weight, (stride, stride), "VALID",
        dimension_numbers=("NCHW", "OIHW", "NCHW"),
        precision=jax.lax.Precision.HIGHEST)
    y_conv = y_conv + conv_bias[None, :, None, None]
    y_bn = (y_conv - running_mean[None, :, None, None]) \
        * (gamma / jnp.sqrt(running_var + BN_EPS))[None, :, None, None] \
        + beta[None, :, None, None]
    y_ref = y_bn * jax.nn.sigmoid(y_bn)

    assert y.shape == y_ref.shape == (N, C_out, H, W), (y.shape, y_ref.shape)
    assert y.dtype == x.dtype
    max_err = float(jnp.max(jnp.abs(y - y_ref)))
    assert jnp.allclose(y, y_ref, atol=2e-3, rtol=2e-3), f"f32 max abs err {max_err}"

    # bf16 MXU operands (recommended on v6e/v7x), f32 accumulation -> looser tolerance.
    y_bf16 = conv_bn_acti(x, weight, conv_bias, gamma, beta, running_mean, running_var,
                          stride=stride, act_type="swish", compute_dtype=jnp.bfloat16)
    jax.block_until_ready(y_bf16)
    max_err_bf16 = float(jnp.max(jnp.abs(y_bf16 - y_ref)))
    assert jnp.allclose(y_bf16, y_ref, atol=5e-2, rtol=5e-2), f"bf16 max abs err {max_err_bf16}"

    print("KERNEL_OK")
</pallas_src>

<mosaic_0001>
module attributes {stable_mosaic.version = 11 : i64} {
  func.func @_conv_bn_act_kernel(%arg0: i32, %arg1: memref<1x4x432xf32, #tpu.memory_space<vmem>>, %arg2: memref<9x8x4xf32, #tpu.memory_space<vmem>>, %arg3: memref<8x1xf32, #tpu.memory_space<vmem>>, %arg4: memref<1x8x384xf32, #tpu.memory_space<vmem>>) attributes {dimension_semantics = [#tpu.dimension_semantics<parallel>], iteration_bounds = array<i64: 2>, scalar_prefetch = 0 : i64, scratch_operands = 0 : i64, tpu.core_type = #tpu.core_type<tc>, window_params = [{transform_indices = @transform_0, window_bounds = array<i64: 1, 4, 432>}, {pipeline_mode = #tpu.pipeline_mode<synchronous>, transform_indices = @transform_1, window_bounds = array<i64: 9, 8, 4>}, {pipeline_mode = #tpu.pipeline_mode<synchronous>, transform_indices = @transform_2, window_bounds = array<i64: 8, 1>}, {transform_indices = @transform_3, window_bounds = array<i64: 1, 8, 384>}]} {
    %c0 = arith.constant 0 : index
    %c0_0 = arith.constant 0 : index
    %c0_1 = arith.constant 0 : index
    %0 = vector.load %arg2[%c0, %c0_0, %c0_1] : memref<9x8x4xf32, #tpu.memory_space<vmem>>, vector<1x8x4xf32>
    %1 = vector.shape_cast %0 : vector<1x8x4xf32> to vector<8x4xf32>
    %c0_2 = arith.constant 0 : index
    %c0_3 = arith.constant 0 : index
    %c0_4 = arith.constant 0 : index
    %2 = vector.load %arg1[%c0_2, %c0_3, %c0_4] : memref<1x4x432xf32, #tpu.memory_space<vmem>>, vector<1x4x384xf32>
    %3 = vector.shape_cast %2 : vector<1x4x384xf32> to vector<4x384xf32>
    %cst = arith.constant dense<0.000000e+00> : vector<8x384xf32>
    %4 = tpu.matmul %1, %3, %cst {dimension_numbers = #tpu.dot_dimension_numbers<[1], [0], [0], [1], [0, 0, 1, 1], [], []>} : vector<8x4xf32>, vector<4x384xf32>, vector<8x384xf32> -> vector<8x384xf32>
    %c1 = arith.constant 1 : index
    %c0_5 = arith.constant 0 : index
    %c0_6 = arith.constant 0 : index
    %5 = vector.load %arg2[%c1, %c0_5, %c0_6] : memref<9x8x4xf32, #tpu.memory_space<vmem>>, vector<1x8x4xf32>
    %6 = vector.shape_cast %5 : vector<1x8x4xf32> to vector<8x4xf32>
    %c0_7 = arith.constant 0 : index
    %c0_8 = arith.constant 0 : index
    %c1_9 = arith.constant 1 : index
    %7 = vector.load %arg1[%c0_7, %c0_8, %c1_9] : memref<1x4x432xf32, #tpu.memory_space<vmem>>, vector<1x4x384xf32>
    %8 = vector.shape_cast %7 : vector<1x4x384xf32> to vector<4x384xf32>
    %cst_10 = arith.constant dense<0.000000e+00> : vector<8x384xf32>
    %9 = tpu.matmul %6, %8, %cst_10 {dimension_numbers = #tpu.dot_dimension_numbers<[1], [0], [0], [1], [0, 0, 1, 1], [], []>} : vector<8x4xf32>, vector<4x384xf32>, vector<8x384xf32> -> vector<8x384xf32>
    %10 = arith.addf %4, %9 : vector<8x384xf32>
    %c2 = arith.constant 2 : index
    %c0_11 = arith.constant 0 : index
    %c0_12 = arith.constant 0 : index
    %11 = vector.load %arg2[%c2, %c0_11, %c0_12] : memref<9x8x4xf32, #tpu.memory_space<vmem>>, vector<1x8x4xf32>
    %12 = vector.shape_cast %11 : vector<1x8x4xf32> to vector<8x4xf32>
    %c0_13 = arith.constant 0 : index
    %c0_14 = arith.constant 0 : index
    %c2_15 = arith.constant 2 : index
    %13 = vector.load %arg1[%c0_13, %c0_14, %c2_15] : memref<1x4x432xf32, #tpu.memory_space<vmem>>, vector<1x4x384xf32>
    %14 = vector.shape_cast %13 : vector<1x4x384xf32> to vector<4x384xf32>
    %cst_16 = arith.constant dense<0.000000e+00> : vector<8x384xf32>
    %15 = tpu.matmul %12, %14, %cst_16 {dimension_numbers = #tpu.dot_dimension_numbers<[1], [0], [0], [1], [0, 0, 1, 1], [], []>} : vector<8x4xf32>, vector<4x384xf32>, vector<8x384xf32> -> vector<8x384xf32>
    %16 = arith.addf %10, %15 : vector<8x384xf32>
    %c3 = arith.constant 3 : index
    %c0_17 = arith.constant 0 : index
    %c0_18 = arith.constant 0 : index
    %17 = vector.load %arg2[%c3, %c0_17, %c0_18] : memref<9x8x4xf32, #tpu.memory_space<vmem>>, vector<1x8x4xf32>
    %18 = vector.shape_cast %17 : vector<1x8x4xf32> to vector<8x4xf32>
    %c0_19 = arith.constant 0 : index
    %c0_20 = arith.constant 0 : index
    %c18 = arith.constant 18 : index
    %19 = vector.load %arg1[%c0_19, %c0_20, %c18] : memref<1x4x432xf32, #tpu.memory_space<vmem>>, vector<1x4x384xf32>
    %20 = vector.shape_cast %19 : vector<1x4x384xf32> to vector<4x384xf32>
    %cst_21 = arith.constant dense<0.000000e+00> : vector<8x384xf32>
    %21 = tpu.matmul %18, %20, %cst_21 {dimension_numbers = #tpu.dot_dimension_numbers<[1], [0], [0], [1], [0, 0, 1, 1], [], []>} : vector<8x4xf32>, vector<4x384xf32>, vector<8x384xf32> -> vector<8x384xf32>
    %22 = arith.addf %16, %21 : vector<8x384xf32>
    %c4 = arith.constant 4 : index
    %c0_22 = arith.constant 0 : index
    %c0_23 = arith.constant 0 : index
    %23 = vector.load %arg2[%c4, %c0_22, %c0_23] : memref<9x8x4xf32, #tpu.memory_space<vmem>>, vector<1x8x4xf32>
    %24 = vector.shape_cast %23 : vector<1x8x4xf32> to vector<8x4xf32>
    %c0_24 = arith.constant 0 : index
    %c0_25 = arith.constant 0 : index
    %c19 = arith.constant 19 : index
    %25 = vector.load %arg1[%c0_24, %c0_25, %c19] : memref<1x4x432xf32, #tpu.memory_space<vmem>>, vector<1x4x384xf32>
    %26 = vector.shape_cast %25 : vector<1x4x384xf32> to vector<4x384xf32>
    %cst_26 = arith.constant dense<0.000000e+00> : vector<8x384xf32>
    %27 = tpu.matmul %24, %26, %cst_26 {dimension_numbers = #tpu.dot_dimension_numbers<[1], [0], [0], [1], [0, 0, 1, 1], [], []>} : vector<8x4xf32>, vector<4x384xf32>, vector<8x384xf32> -> vector<8x384xf32>
    %28 = arith.addf %22, %27 : vector<8x384xf32>
    %c5 = arith.constant 5 : index
    %c0_27 = arith.constant 0 : index
    %c0_28 = arith.constant 0 : index
    %29 = vector.load %arg2[%c5, %c0_27, %c0_28] : memref<9x8x4xf32, #tpu.memory_space<vmem>>, vector<1x8x4xf32>
    %30 = vector.shape_cast %29 : vector<1x8x4xf32> to vector<8x4xf32>
    %c0_29 = arith.constant 0 : index
    %c0_30 = arith.constant 0 : index
    %c20 = arith.constant 20 : index
    %31 = vector.load %arg1[%c0_29, %c0_30, %c20] : memref<1x4x432xf32, #tpu.memory_space<vmem>>, vector<1x4x384xf32>
    %32 = vector.shape_cast %31 : vector<1x4x384xf32> to vector<4x384xf32>
    %cst_31 = arith.constant dense<0.000000e+00> : vector<8x384xf32>
    %33 = tpu.matmul %30, %32, %cst_31 {dimension_numbers = #tpu.dot_dimension_numbers<[1], [0], [0], [1], [0, 0, 1, 1], [], []>} : vector<8x4xf32>, vector<4x384xf32>, vector<8x384xf32> -> vector<8x384xf32>
    %34 = arith.addf %28, %33 : vector<8x384xf32>
    %c6 = arith.constant 6 : index
    %c0_32 = arith.constant 0 : index
    %c0_33 = arith.constant 0 : index
    %35 = vector.load %arg2[%c6, %c0_32, %c0_33] : memref<9x8x4xf32, #tpu.memory_space<vmem>>, vector<1x8x4xf32>
    %36 = vector.shape_cast %35 : vector<1x8x4xf32> to vector<8x4xf32>
    %c0_34 = arith.constant 0 : index
    %c0_35 = arith.constant 0 : index
    %c36 = arith.constant 36 : index
    %37 = vector.load %arg1[%c0_34, %c0_35, %c36] : memref<1x4x432xf32, #tpu.memory_space<vmem>>, vector<1x4x384xf32>
    %38 = vector.shape_cast %37 : vector<1x4x384xf32> to vector<4x384xf32>
    %cst_36 = arith.constant dense<0.000000e+00> : vector<8x384xf32>
    %39 = tpu.matmul %36, %38, %cst_36 {dimension_numbers = #tpu.dot_dimension_numbers<[1], [0], [0], [1], [0, 0, 1, 1], [], []>} : vector<8x4xf32>, vector<4x384xf32>, vector<8x384xf32> -> vector<8x384xf32>
    %40 = arith.addf %34, %39 : vector<8x384xf32>
    %c7 = arith.constant 7 : index
    %c0_37 = arith.constant 0 : index
    %c0_38 = arith.constant 0 : index
    %41 = vector.load %arg2[%c7, %c0_37, %c0_38] : memref<9x8x4xf32, #tpu.memory_space<vmem>>, vector<1x8x4xf32>
    %42 = vector.shape_cast %41 : vector<1x8x4xf32> to vector<8x4xf32>
    %c0_39 = arith.constant 0 : index
    %c0_40 = arith.constant 0 : index
    %c37 = arith.constant 37 : index
    %43 = vector.load %arg1[%c0_39, %c0_40, %c37] : memref<1x4x432xf32, #tpu.memory_space<vmem>>, vector<1x4x384xf32>
    %44 = vector.shape_cast %43 : vector<1x4x384xf32> to vector<4x384xf32>
    %cst_41 = arith.constant dense<0.000000e+00> : vector<8x384xf32>
    %45 = tpu.matmul %42, %44, %cst_41 {dimension_numbers = #tpu.dot_dimension_numbers<[1], [0], [0], [1], [0, 0, 1, 1], [], []>} : vector<8x4xf32>, vector<4x384xf32>, vector<8x384xf32> -> vector<8x384xf32>
    %46 = arith.addf %40, %45 : vector<8x384xf32>
    %c8 = arith.constant 8 : index
    %c0_42 = arith.constant 0 : index
    %c0_43 = arith.constant 0 : index
    %47 = vector.load %arg2[%c8, %c0_42, %c0_43] : memref<9x8x4xf32, #tpu.memory_space<vmem>>, vector<1x8x4xf32>
    %48 = vector.shape_cast %47 : vector<1x8x4xf32> to vector<8x4xf32>
    %c0_44 = arith.constant 0 : index
    %c0_45 = arith.constant 0 : index
    %c38 = arith.constant 38 : index
    %49 = vector.load %arg1[%c0_44, %c0_45, %c38] : memref<1x4x432xf32, #tpu.memory_space<vmem>>, vector<1x4x384xf32>
    %50 = vector.shape_cast %49 : vector<1x4x384xf32> to vector<4x384xf32>
    %cst_46 = arith.constant dense<0.000000e+00> : vector<8x384xf32>
    %51 = tpu.matmul %48, %50, %cst_46 {dimension_numbers = #tpu.dot_dimension_numbers<[1], [0], [0], [1], [0, 0, 1, 1], [], []>} : vector<8x4xf32>, vector<4x384xf32>, vector<8x384xf32> -> vector<8x384xf32>
    %52 = arith.addf %46, %51 : vector<8x384xf32>
    %c0_47 = arith.constant 0 : index
    %c0_48 = arith.constant 0 : index
    %53 = vector.load %arg3[%c0_47, %c0_48] : memref<8x1xf32, #tpu.memory_space<vmem>>, vector<8x1xf32>
    %54 = vector.broadcast %53 : vector<8x1xf32> to vector<8x384xf32>
    %55 = arith.addf %52, %54 : vector<8x384xf32>
    %cst_49 = arith.constant 5.000000e-01 : f32
    %56 = vector.broadcast %cst_49 : f32 to vector<8x384xf32>
    %57 = arith.mulf %56, %55 : vector<8x384xf32>
    %58 = math.tanh %57 : vector<8x384xf32>
    %cst_50 = arith.constant 5.000000e-01 : f32
    %59 = vector.broadcast %cst_50 : f32 to vector<8x384xf32>
    %60 = arith.mulf %59, %58 : vector<8x384xf32>
    %cst_51 = arith.constant 5.000000e-01 : f32
    %61 = vector.broadcast %cst_51 : f32 to vector<8x384xf32>
    %62 = arith.addf %60, %61 : vector<8x384xf32>
    %63 = arith.mulf %55, %62 : vector<8x384xf32>
    %c0_52 = arith.constant 0 : index
    %c0_53 = arith.constant 0 : index
    %c0_54 = arith.constant 0 : index
    %64 = vector.load %arg4[%c0_52, %c0_53, %c0_54] : memref<1x8x384xf32, #tpu.memory_space<vmem>>, vector<1x8x384xf32>
    %65 = vector.shape_cast %64 : vector<1x8x384xf32> to vector<8x384xf32>
    %66 = vector.shape_cast %63 : vector<8x384xf32> to vector<1x8x384xf32>
    tpu.vector_store %arg4[%c0_52, %c0_53, %c0_54], %66 {strides = array<i32>} : memref<1x8x384xf32, #tpu.memory_space<vmem>>, vector<1x8x384xf32>,
    return
  }
  func.func @transform_0(%arg0: i32) -> (i32, i32, i32) {
    %c0_i32 = arith.constant 0 : i32
    %c0_i32_0 = arith.constant 0 : i32
    %c0_i32_1 = arith.constant 0 : i32
    return %arg0, %c0_i32, %c0_i32_0 : i32, i32, i32
  }
  func.func @transform_1(%arg0: i32) -> (i32, i32, i32) {
    %c0_i32 = arith.constant 0 : i32
    %c0_i32_0 = arith.constant 0 : i32
    %c0_i32_1 = arith.constant 0 : i32
    %c0_i32_2 = arith.constant 0 : i32
    return %c0_i32, %c0_i32_0, %c0_i32_1 : i32, i32, i32
  }
  func.func @transform_2(%arg0: i32) -> (i32, i32) {
    %c0_i32 = arith.constant 0 : i32
    %c0_i32_0 = arith.constant 0 : i32
    %c0_i32_1 = arith.constant 0 : i32
    return %c0_i32, %c0_i32_0 : i32, i32
  }
  func.func @transform_3(%arg0: i32) -> (i32, i32, i32) {
    %c0_i32 = arith.constant 0 : i32
    %c0_i32_0 = arith.constant 0 : i32
    %c0_i32_1 = arith.constant 0 : i32
    return %arg0, %c0_i32, %c0_i32_0 : i32, i32, i32
  }
}

</mosaic_0001>

<llo_original>
// kernel: tpu_custom_call.1
$region0: #{tpu_custom_call.1}
  #allocation0 [shape = 'u32[]', space=smem, size = 0x4, offset = 0x4, fixed_abs, tag = 'smem constant byte address 0x4 - core index']
  #allocation1 [shape = 'u32[144,128]{1,0:T(1,128)}', space=vmem, size = 0x12000, scoped, tag = 'internal scratch']
  %s0 = inlined_call_operand.vmem [shape: f32[2,4,432], index: 0, kind: input, shape index: {}]
  %s1 = inlined_call_operand.vmem [shape: f32[9,8,4], index: 1, kind: input, shape index: {}]
  %s2 = inlined_call_operand.vmem [shape: f32[8,1], index: 2, kind: input, shape index: {}]
  %s3 = inlined_call_operand.hbm [shape: f32[2,8,384], index: 3, kind: output, shape index: {}]
  %s4 = sld [smem:[#allocation0]]
  $region45: #{tpu_custom_call.1} parent=0
    _
  %s6 = ssub.s32 1, %s4
  %s7 = scalar_select 0, %s6, %s4
  $region1: #{tpu_custom_call.1} parent=0
    #allocation2 [shape = 'u8[24576]{0}', space=vmem, size = 0x6000, scoped, tag = 'output window, operand 0']
    #allocation3 [shape = 's32[2]{0}', space=sflag, size = 0x8, scoped, tag = 'scoped memory for tpu_custom_call.1']
    %8 = vsyncpa [#allocation3], 0
    %s9 = scalar_lea.sflag [#allocation3], 1
    %10 = vsyncpa %s9, 0
    loop: start=0, step=1, limit=4
    $region2: #{tpu_custom_call.1} parent=1 // loop_pre_header
      _
    $region3: #{tpu_custom_call.1} parent=1 // loop_header
      %s12 = sphi 0, %s16
      %p13 = scmp.ge.s32.totalorder %s12, 4
      %s22 = sphi 0, %s24
      %s25 = sphi 0, %s22
      %s26 = sphi 0, %s25
      %s42 = sphi 0, %s26
      %s46 = sphi 0, %s46
      %s48 = sphi 0, %s46
      %s49 = sphi 0, %s48
      %s63 = sphi 0, %s49
      %s67 = sphi 0, %s67
      %s69 = sphi 0, %s67
      %s70 = sphi 0, %s69
      %s84 = sphi 0, %s70
      %s90 = sphi 0, %s92
      %s93 = sphi 0, %s90
      %s94 = sphi 0, %s93
      %s110 = sphi 0, %s94
    $region4: #{tpu_custom_call.1} parent=1 // loop_header_branch
      %15 = sbr.rel (%p13) target = $region8
    $region5: #{tpu_custom_call.1} parent=1 // loop_body
      %s17 = ssub.s32 %s12, 1
      %s18 = ssub.s32 %s12, 2
      %s19 = sadd.s32 %s12, 1
      %s20 = ssub.s32 %s12, %s19
      %p21 = scmp.eq.s32.totalorder %s20, 0
      %s23 = sadd.s32 %s22, 1
      %s24 = scalar_select %p21, %s22, %s23
      %p27 = pneg %p21
      %p28 = scmp.eq.s32.totalorder %s12, 1
      %p29 = por %p27, %p28
      %p30 = scmp.ne.s32.totalorder %s22, %s25
      %p31 = scmp.eq.s32.totalorder %s12, 0
      %p32 = por %p30, %p31
      %p33 = scmp.ne.s32.totalorder %s22, %s25
      %p34 = scmp.eq.s32.totalorder %s17, 1
      %p35 = por %p33, %p34
      %p36 = scmp.ne.s32.totalorder %s25, %s26
      %p37 = scmp.eq.s32.totalorder %s17, 0
      %p38 = por %p36, %p37
      %p39 = scmp.ne.s32.totalorder %s25, %s26
      %p40 = scmp.eq.s32.totalorder %s18, 1
      %p41 = por %p39, %p40
      %p43 = scmp.ne.s32.totalorder %s26, %s42
      %p44 = scmp.eq.s32.totalorder %s18, 0
      %p45 = por %p43, %p44
      %s47 = sadd.s32 %s46, 1
      %p50 = scmp.eq.s32.totalorder %s12, 1
      %p51 = scmp.ne.s32.totalorder %s46, %s48
      %p52 = scmp.eq.s32.totalorder %s12, 0
      %p53 = por %p51, %p52
      %p54 = scmp.ne.s32.totalorder %s46, %s48
      %p55 = scmp.eq.s32.totalorder %s17, 1
      %p56 = por %p54, %p55
      %p57 = scmp.ne.s32.totalorder %s48, %s49
      %p58 = scmp.eq.s32.totalorder %s17, 0
      %p59 = por %p57, %p58
      %p60 = scmp.ne.s32.totalorder %s48, %s49
      %p61 = scmp.eq.s32.totalorder %s18, 1
      %p62 = por %p60, %p61
      %p64 = scmp.ne.s32.totalorder %s49, %s63
      %p65 = scmp.eq.s32.totalorder %s18, 0
      %p66 = por %p64, %p65
      %s68 = sadd.s32 %s67, 1
      %p71 = scmp.eq.s32.totalorder %s12, 1
      %p72 = scmp.ne.s32.totalorder %s67, %s69
      %p73 = scmp.eq.s32.totalorder %s12, 0
      %p74 = por %p72, %p73
      %p75 = scmp.ne.s32.totalorder %s67, %s69
      %p76 = scmp.eq.s32.totalorder %s17, 1
      %p77 = por %p75, %p76
      %p78 = scmp.ne.s32.totalorder %s69, %s70
      %p79 = scmp.eq.s32.totalorder %s17, 0
      %p80 = por %p78, %p79
      %p81 = scmp.ne.s32.totalorder %s69, %s70
      %p82 = scmp.eq.s32.totalorder %s18, 1
      %p83 = por %p81, %p82
      %p85 = scmp.ne.s32.totalorder %s70, %s84
      %p86 = scmp.eq.s32.totalorder %s18, 0
      %p87 = por %p85, %p86
      %s88 = ssub.s32 %s12, %s19
      %p89 = scmp.eq.s32.totalorder %s88, 0
      %s91 = sadd.s32 %s90, 1
      %s92 = scalar_select %p89, %s90, %s91
      %p95 = pneg %p89
      %p96 = scmp.eq.s32.totalorder %s12, 1
      %p97 = por %p95, %p96
      %p98 = scmp.ne.s32.totalorder %s90, %s93
      %p99 = scmp.eq.s32.totalorder %s12, 0
      %p100 = por %p98, %p99
      %p101 = scmp.ne.s32.totalorder %s90, %s93
      %p102 = scmp.eq.s32.totalorder %s17, 1
      %p103 = por %p101, %p102
      %p104 = scmp.ne.s32.totalorder %s93, %s94
      %p105 = scmp.eq.s32.totalorder %s17, 0
      %p106 = por %p104, %p105
      %p107 = scmp.ne.s32.totalorder %s93, %s94
      %p108 = scmp.eq.s32.totalorder %s18, 1
      %p109 = por %p107, %p108
      %p111 = scmp.ne.s32.totalorder %s94, %s110
      %p112 = scmp.eq.s32.totalorder %s18, 0
      %p113 = por %p111, %p112
      %p114 = scmp.le.s32.totalorder 1, %s12
      %p115 = scmp.lt.s32.totalorder %s12, 3
      %p116 = pnand %p114, %p115
      %p117 = pneg %p116
      // Predicated region
      $region9: #{tpu_custom_call.1} parent=5 // pred_check
        _
      $region10: #{tpu_custom_call.1} parent=5 // pred_check_branch
        %119 = sbr.rel (%p116) target = $region12
      $region11: #{tpu_custom_call.1} parent=5 // pred_region
        %s120 = ssub.s32 %s12, 1
        // Predicated region
        $region13: #{tpu_custom_call.1} parent=11 // pred_check
          %p121 = pneg %p59
        $region14: #{tpu_custom_call.1} parent=11 // pred_check_branch
          %123 = sbr.rel (%p121) target = $region16
        $region15: #{tpu_custom_call.1} parent=11 // pred_region
          _
        $region16: #{tpu_custom_call.1} parent=11 // pred_fallthru
          _
        // Predicated region
        $region17: #{tpu_custom_call.1} parent=11 // pred_check
          %p124 = pneg %p80
        $region18: #{tpu_custom_call.1} parent=11 // pred_check_branch
          %126 = sbr.rel (%p124) target = $region20
        $region19: #{tpu_custom_call.1} parent=11 // pred_region
          _
        $region20: #{tpu_custom_call.1} parent=11 // pred_fallthru
          _
      $region12: #{tpu_custom_call.1} parent=5 // pred_fallthru
        _
      %p127 = scmp.lt.s32.totalorder %s12, 2
      // Predicated region
      $region21: #{tpu_custom_call.1} parent=5 // pred_check
        %p128 = pneg %p127
      $region22: #{tpu_custom_call.1} parent=5 // pred_check_branch
        %130 = sbr.rel (%p128) target = $region24
      $region23: #{tpu_custom_call.1} parent=5 // pred_region
        // Predicated region
        $region25: #{tpu_custom_call.1} parent=23 // pred_check
          %p131 = pneg %p32
        $region26: #{tpu_custom_call.1} parent=23 // pred_check_branch
          %133 = sbr.rel (%p131) target = $region28
        $region27: #{tpu_custom_call.1} parent=23 // pred_region
          %p134 = scmp.lt.s32.totalorder %s12, 1
          %s135 = scalar_select %p134, %s12, 1
          %s136 = smul.addr %s135, 4
          %s137 = smul.addr %s136, 4
          %s138 = scalar_lea.vmem %s0, %s137
        $region28: #{tpu_custom_call.1} parent=23 // pred_fallthru
          _
      $region24: #{tpu_custom_call.1} parent=5 // pred_fallthru
        _
      %p139 = scmp.le.s32.totalorder 1, %s12
      %p140 = scmp.lt.s32.totalorder %s12, 3
      %p141 = pnand %p139, %p140
      %p142 = pneg %p141
      // Predicated region
      $region29: #{tpu_custom_call.1} parent=5 // pred_check
        _
      $region30: #{tpu_custom_call.1} parent=5 // pred_check_branch
        %144 = sbr.rel (%p141) target = $region32
      $region31: #{tpu_custom_call.1} parent=5 // pred_region
        %s145 = ssub.s32 %s12, 1
        %p146 = scmp.lt.s32.totalorder %s17, 1
        %s147 = scalar_select %p146, %s17, 1
        %s148 = smul.addr %s147, 4
        %s149 = smul.addr %s148, 4
        %s150 = scalar_lea.vmem %s0, %s149
        %p151 = pneg %p38
        %p152 = pneg %p35
        %p153 = pneg %p59
        %p154 = pneg %p56
        %p155 = pneg %p80
        %p156 = pneg %p77
        %p157 = pneg %p106
        %p158 = pneg %p103
        %s159 = sand.u32 %s93, 1
        %s160 = scalar_lea.sflag [#allocation3], %s159
        %s161 = sand.u32 %s93, 1
        %s162 = smul.addr %s161, 24
        %s163 = scalar_lea.vmem [#allocation2], %s162
        %p164 = scmp.lt.s32.totalorder %s17, 1
        %s165 = scalar_select %p164, %s17, 1
        %s166 = smul.addr %s165, 4
        %s167 = smul.addr %s166, 4
        %s168 = scalar_lea.vmem %s0, %s167
        %v169 = vld [vmem:[%s1] sm:$0xff]
        %v170 = vld [vmem:[%s168] sm:$0xff]
        %v171 = vld [vmem:[%s168 + $0x8] sm:$0xf]
        %s172 = scalar_lea.vmem %s1, 8
        %v173 = vld [vmem:[%s172] sm:$0xff]
        %v174 = vld [vmem:[%s168 + $0x8] sm:$0xff]
        %v177 = vcombine.high %v170, %v170
        %v178 = vcombine.high %v174, %v174
        %179 = vrot.lane.b32.xlu0 %v170, 127
        %v180 = vpop.permute.xlu0 %179
        %181 = vrot.lane.b32.xlu0 %v177, 127
        %v182 = vpop.permute.xlu0 %181
        %183 = vrot.lane.b32.xlu0 %v174, 127
        %v184 = vpop.permute.xlu0 %183
        %185 = vrot.lane.b32.xlu0 %v178, 127
        %v186 = vpop.permute.xlu0 %185
        %vm187 = vcmask 1039360
        %v188 = vsel %vm187, %v180, %v182
        %v189 = vsel %vm187, %v182, %v184
        %v190 = vsel %vm187, %v184, %v186
        %vm191 = vcmask 31744
        %v193 = vsel %vm191, %v173, 0
        %vm195 = vcmask 1043456
        %v196 = vsel %vm195, %v188, 0
        %v198 = vsel %vm195, %v189, 0
        %v200 = vsel %vm195, %v190, 0
        %202 = vmatprep.subr.mxu0 %v198
        %203 = vmatpush1.msra.mxu0 %v196
        %204 = vmatprep.subr.mxu0 0.0
        %205 = vmatpush1.msra.mxu0 0.0
        %206 = vmatprep.subr.mxu0 0.0
        %207 = vmatpush1.msra.mxu0 0.0
        %208 = vmatprep.subr.mxu0 0.0
        %209 = vmatpush1.msra.mxu0 0.0
        %210 = vmatprep.subr.mxu0 0.0
        %211 = vmatpush1.msra.mxu0 0.0
        %212 = vmatprep.subr.mxu0 0.0
        %213 = vmatpush1.msra.mxu0 0.0
        %214 = vmatprep.subr.mxu0 0.0
        %215 = vmatpush1.msra.mxu0 0.0
        %216 = vmatprep.subr.mxu0 0.0
        %217 = vmatpush1.msra.mxu0 0.0
        %218 = vmatprep.subr.mxu0 0.0
        %219 = vmatpush1.msra.mxu0 0.0
        %220 = vmatprep.subr.mxu0 0.0
        %221 = vmatpush1.msra.mxu0 0.0
        %222 = vmatprep.subr.mxu0 0.0
        %223 = vmatpush1.msra.mxu0 0.0
        %224 = vmatprep.subr.mxu0 0.0
        %225 = vmatpush1.msra.mxu0 0.0
        %226 = vmatprep.subr.mxu0 0.0
        %227 = vmatpush1.msra.mxu0 0.0
        %228 = vmatprep.subr.mxu0 0.0
        %229 = vmatpush1.msra.mxu0 0.0
        %230 = vmatprep.subr.mxu0 0.0
        %231 = vmatpush1.msra.mxu0 0.0
        %232 = vmatprep.subr.mxu0 0.0
        %233 = vmatpush1.msra.mxu0 0.0
        %234 = vmatprep.subr.mxu0 0.0
        %235 = vmatpush1.msra.mxu0 0.0
        %236 = vmatprep.subr.mxu0 0.0
        %237 = vmatpush1.msra.mxu0 0.0
        %238 = vmatprep.subr.mxu0 0.0
        %239 = vmatpush1.msra.mxu0 0.0
        %240 = vmatprep.subr.mxu0 0.0
        %241 = vmatpush1.msra.mxu0 0.0
        %242 = vmatprep.subr.mxu0 0.0
        %243 = vmatpush1.msra.mxu0 0.0
        %244 = vmatprep.subr.mxu0 0.0
        %245 = vmatpush1.msra.mxu0 0.0
        %246 = vmatprep.subr.mxu0 0.0
        %247 = vmatpush1.msra.mxu0 0.0
        %248 = vmatprep.subr.mxu0 0.0
        %249 = vmatpush1.msra.mxu0 0.0
        %250 = vmatprep.subr.mxu0 0.0
        %251 = vmatpush1.msra.mxu0 0.0
        %252 = vmatprep.subr.mxu0 0.0
        %253 = vmatpush1.msra.mxu0 0.0
        %254 = vmatprep.subr.mxu0 0.0
        %255 = vmatpush1.msra.mxu0 0.0
        %256 = vmatprep.subr.mxu0 0.0
        %257 = vmatpush1.msra.mxu0 0.0
        %258 = vmatprep.subr.mxu0 0.0
        %259 = vmatpush1.msra.mxu0 0.0
        %260 = vmatprep.subr.mxu0 0.0
        %261 = vmatpush1.msra.mxu0 0.0
        %262 = vmatprep.subr.mxu0 0.0
        %263 = vmatpush1.msra.mxu0 0.0
        %264 = vmatprep.subr.mxu0 0.0
        %265 = vmatpush1.msra.mxu0 0.0
        %266 = vmatprep.mubr.f32.mxu0 0.0
        %267 = vmatmul.mubr.f32.gmra.mrb[0].mxu0 %v193
        %v268 = vpop.f32.mrb[0].mxu0
        %v269 = vadd.f32 0.0, %v268
        %v270 = vpop.f32.mrb[0].mxu0
        %v271 = vadd.f32 0.0, %v270
        %272 = vdwg.mxu0
        %273 = vmatprep.subr.mxu0 0.0
        %274 = vmatpush1.msra.mxu0 %v200
        %275 = vmatprep.subr.mxu0 0.0
        %276 = vmatpush1.msra.mxu0 0.0
        %277 = vmatprep.subr.mxu0 0.0
        %278 = vmatpush1.msra.mxu0 0.0
        %279 = vmatprep.subr.mxu0 0.0
        %280 = vmatpush1.msra.mxu0 0.0
        %281 = vmatprep.subr.mxu0 0.0
        %282 = vmatpush1.msra.mxu0 0.0
        %283 = vmatprep.subr.mxu0 0.0
        %284 = vmatpush1.msra.mxu0 0.0
        %285 = vmatprep.subr.mxu0 0.0
        %286 = vmatpush1.msra.mxu0 0.0
        %287 = vmatprep.subr.mxu0 0.0
        %288 = vmatpush1.msra.mxu0 0.0
        %289 = vmatprep.subr.mxu0 0.0
        %290 = vmatpush1.msra.mxu0 0.0
        %291 = vmatprep.subr.mxu0 0.0
        %292 = vmatpush1.msra.mxu0 0.0
        %293 = vmatprep.subr.mxu0 0.0
        %294 = vmatpush1.msra.mxu0 0.0
        %295 = vmatprep.subr.mxu0 0.0
        %296 = vmatpush1.msra.mxu0 0.0
        %297 = vmatprep.subr.mxu0 0.0
        %298 = vmatpush1.msra.mxu0 0.0
        %299 = vmatprep.subr.mxu0 0.0
        %300 = vmatpush1.msra.mxu0 0.0
        %301 = vmatprep.subr.mxu0 0.0
        %302 = vmatpush1.msra.mxu0 0.0
        %303 = vmatprep.subr.mxu0 0.0
        %304 = vmatpush1.msra.mxu0 0.0
        %305 = vmatprep.subr.mxu0 0.0
        %306 = vmatpush1.msra.mxu0 0.0
        %307 = vmatprep.subr.mxu0 0.0
        %308 = vmatpush1.msra.mxu0 0.0
        %309 = vmatprep.subr.mxu0 0.0
        %310 = vmatpush1.msra.mxu0 0.0
        %311 = vmatprep.subr.mxu0 0.0
        %312 = vmatpush1.msra.mxu0 0.0
        %313 = vmatprep.subr.mxu0 0.0
        %314 = vmatpush1.msra.mxu0 0.0
        %315 = vmatprep.subr.mxu0 0.0
        %316 = vmatpush1.msra.mxu0 0.0
        %317 = vmatprep.subr.mxu0 0.0
        %318 = vmatpush1.msra.mxu0 0.0
        %319 = vmatprep.subr.mxu0 0.0
        %320 = vmatpush1.msra.mxu0 0.0
        %321 = vmatprep.subr.mxu0 0.0
        %322 = vmatpush1.msra.mxu0 0.0
        %323 = vmatprep.subr.mxu0 0.0
        %324 = vmatpush1.msra.mxu0 0.0
        %325 = vmatprep.subr.mxu0 0.0
        %326 = vmatpush1.msra.mxu0 0.0
        %327 = vmatprep.subr.mxu0 0.0
        %328 = vmatpush1.msra.mxu0 0.0
        %329 = vmatprep.subr.mxu0 0.0
        %330 = vmatpush1.msra.mxu0 0.0
        %331 = vmatprep.subr.mxu0 0.0
        %332 = vmatpush1.msra.mxu0 0.0
        %333 = vmatprep.subr.mxu0 0.0
        %334 = vmatpush1.msra.mxu0 0.0
        %335 = vmatprep.subr.mxu0 0.0
        %336 = vmatpush1.msra.mxu0 0.0
        %337 = vmatprep.mubr.f32.mxu0 0.0
        %338 = vmatmul.mubr.f32.gmra.mrb[0].mxu0 %v193
        %v339 = vpop.f32.mrb[0].mxu0
        %v340 = vadd.f32 0.0, %v339
        %v341 = vpop.f32.mrb[0].mxu0
        %342 = vdwg.mxu0
        %v345 = vsel %vm191, %v169, 0
        %v347 = vsel %vm195, %v170, 0
        %v349 = vsel %vm195, %v177, 0
        %v351 = vsel %vm195, %v171, 0
        %353 = vmatprep.subr.mxu0 %v349
        %354 = vmatpush1.msra.mxu0 %v347
        %355 = vmatprep.subr.mxu0 0.0
        %356 = vmatpush1.msra.mxu0 0.0
        %357 = vmatprep.subr.mxu0 0.0
        %358 = vmatpush1.msra.mxu0 0.0
        %359 = vmatprep.subr.mxu0 0.0
        %360 = vmatpush1.msra.mxu0 0.0
        %361 = vmatprep.subr.mxu0 0.0
        %362 = vmatpush1.msra.mxu0 0.0
        %363 = vmatprep.subr.mxu0 0.0
        %364 = vmatpush1.msra.mxu0 0.0
        %365 = vmatprep.subr.mxu0 0.0
        %366 = vmatpush1.msra.mxu0 0.0
        %367 = vmatprep.subr.mxu0 0.0
        %368 = vmatpush1.msra.mxu0 0.0
        %369 = vmatprep.subr.mxu0 0.0
        %370 = vmatpush1.msra.mxu0 0.0
        %371 = vmatprep.subr.mxu0 0.0
        %372 = vmatpush1.msra.mxu0 0.0
        %373 = vmatprep.subr.mxu0 0.0
        %374 = vmatpush1.msra.mxu0 0.0
        %375 = vmatprep.subr.mxu0 0.0
        %376 = vmatpush1.msra.mxu0 0.0
        %377 = vmatprep.subr.mxu0 0.0
        %378 = vmatpush1.msra.mxu0 0.0
        %379 = vmatprep.subr.mxu0 0.0
        %380 = vmatpush1.msra.mxu0 0.0
        %381 = vmatprep.subr.mxu0 0.0
        %382 = vmatpush1.msra.mxu0 0.0
        %383 = vmatprep.subr.mxu0 0.0
        %384 = vmatpush1.msra.mxu0 0.0
        %385 = vmatprep.subr.mxu0 0.0
        %386 = vmatpush1.msra.mxu0 0.0
        %387 = vmatprep.subr.mxu0 0.0
        %388 = vmatpush1.msra.mxu0 0.0
        %389 = vmatprep.subr.mxu0 0.0
        %390 = vmatpush1.msra.mxu0 0.0
        %391 = vmatprep.subr.mxu0 0.0
        %392 = vmatpush1.msra.mxu0 0.0
        %393 = vmatprep.subr.mxu0 0.0
        %394 = vmatpush1.msra.mxu0 0.0
        %395 = vmatprep.subr.mxu0 0.0
        %396 = vmatpush1.msra.mxu0 0.0
        %397 = vmatprep.subr.mxu0 0.0
        %398 = vmatpush1.msra.mxu0 0.0
        %399 = vmatprep.subr.mxu0 0.0
        %400 = vmatpush1.msra.mxu0 0.0
        %401 = vmatprep.subr.mxu0 0.0
        %402 = vmatpush1.msra.mxu0 0.0
        %403 = vmatprep.subr.mxu0 0.0
        %404 = vmatpush1.msra.mxu0 0.0
        %405 = vmatprep.subr.mxu0 0.0
        %406 = vmatpush1.msra.mxu0 0.0
        %407 = vmatprep.subr.mxu0 0.0
        %408 = vmatpush1.msra.mxu0 0.0
        %409 = vmatprep.subr.mxu0 0.0
        %410 = vmatpush1.msra.mxu0 0.0
        %411 = vmatprep.subr.mxu0 0.0
        %412 = vmatpush1.msra.mxu0 0.0
        %413 = vmatprep.subr.mxu0 0.0
        %414 = vmatpush1.msra.mxu0 0.0
        %415 = vmatprep.subr.mxu0 0.0
        %416 = vmatpush1.msra.mxu0 0.0
        %417 = vmatprep.mubr.f32.mxu0 0.0
        %418 = vmatmul.mubr.f32.gmra.mrb[0].mxu0 %v345
        %v419 = vpop.f32.mrb[0].mxu0
        %v420 = vadd.f32 %v269, %v419
        %v421 = vpop.f32.mrb[0].mxu0
        %v422 = vadd.f32 %v271, %v421
        %423 = vdwg.mxu0
        %424 = vmatprep.subr.mxu0 0.0
        %425 = vmatpush1.msra.mxu0 %v351
        %426 = vmatprep.subr.mxu0 0.0
        %427 = vmatpush1.msra.mxu0 0.0
        %428 = vmatprep.subr.mxu0 0.0
        %429 = vmatpush1.msra.mxu0 0.0
        %430 = vmatprep.subr.mxu0 0.0
        %431 = vmatpush1.msra.mxu0 0.0
        %432 = vmatprep.subr.mxu0 0.0
        %433 = vmatpush1.msra.mxu0 0.0
        %434 = vmatprep.subr.mxu0 0.0
        %435 = vmatpush1.msra.mxu0 0.0
        %436 = vmatprep.subr.mxu0 0.0
        %437 = vmatpush1.msra.mxu0 0.0
        %438 = vmatprep.subr.mxu0 0.0
        %439 = vmatpush1.msra.mxu0 0.0
        %440 = vmatprep.subr.mxu0 0.0
        %441 = vmatpush1.msra.mxu0 0.0
        %442 = vmatprep.subr.mxu0 0.0
        %443 = vmatpush1.msra.mxu0 0.0
        %444 = vmatprep.subr.mxu0 0.0
        %445 = vmatpush1.msra.mxu0 0.0
        %446 = vmatprep.subr.mxu0 0.0
        %447 = vmatpush1.msra.mxu0 0.0
        %448 = vmatprep.subr.mxu0 0.0
        %449 = vmatpush1.msra.mxu0 0.0
        %450 = vmatprep.subr.mxu0 0.0
        %451 = vmatpush1.msra.mxu0 0.0
        %452 = vmatprep.subr.mxu0 0.0
        %453 = vmatpush1.msra.mxu0 0.0
        %454 = vmatprep.subr.mxu0 0.0
        %455 = vmatpush1.msra.mxu0 0.0
        %456 = vmatprep.subr.mxu0 0.0
        %457 = vmatpush1.msra.mxu0 0.0
        %458 = vmatprep.subr.mxu0 0.0
        %459 = vmatpush1.msra.mxu0 0.0
        %460 = vmatprep.subr.mxu0 0.0
        %461 = vmatpush1.msra.mxu0 0.0
        %462 = vmatprep.subr.mxu0 0.0
        %463 = vmatpush1.msra.mxu0 0.0
        %464 = vmatprep.subr.mxu0 0.0
        %465 = vmatpush1.msra.mxu0 0.0
        %466 = vmatprep.subr.mxu0 0.0
        %467 = vmatpush1.msra.mxu0 0.0
        %468 = vmatprep.subr.mxu0 0.0
        %469 = vmatpush1.msra.mxu0 0.0
        %470 = vmatprep.subr.mxu0 0.0
        %471 = vmatpush1.msra.mxu0 0.0
        %472 = vmatprep.subr.mxu0 0.0
        %473 = vmatpush1.msra.mxu0 0.0
        %474 = vmatprep.subr.mxu0 0.0
        %475 = vmatpush1.msra.mxu0 0.0
        %476 = vmatprep.subr.mxu0 0.0
        %477 = vmatpush1.msra.mxu0 0.0
        %478 = vmatprep.subr.mxu0 0.0
        %479 = vmatpush1.msra.mxu0 0.0
        %480 = vmatprep.subr.mxu0 0.0
        %481 = vmatpush1.msra.mxu0 0.0
        %482 = vmatprep.subr.mxu0 0.0
        %483 = vmatpush1.msra.mxu0 0.0
        %484 = vmatprep.subr.mxu0 0.0
        %485 = vmatpush1.msra.mxu0 0.0
        %486 = vmatprep.subr.mxu0 0.0
        %487 = vmatpush1.msra.mxu0 0.0
        %488 = vmatprep.mubr.f32.mxu0 0.0
        %489 = vmatmul.mubr.f32.gmra.mrb[0].mxu0 %v345
        %v490 = vpop.f32.mrb[0].mxu0
        %v491 = vadd.f32 %v340, %v490
        %v492 = vpop.f32.mrb[0].mxu0
        %493 = vdwg.mxu0
        %s494 = scalar_lea.vmem %s1, 16
        %v495 = vld [vmem:[%s494] sm:$0xff]
        %v496 = vld [vmem:[%s168] sm:$0xff]
        %v497 = vld [vmem:[%s168 + $0x8] sm:$0xff]
        %v500 = vcombine.high %v496, %v496
        %v501 = vcombine.high %v497, %v497
        %502 = vrot.lane.b32.xlu0 %v496, 126
        %v503 = vpop.permute.xlu0 %502
        %504 = vrot.lane.b32.xlu0 %v500, 126
        %v505 = vpop.permute.xlu0 %504
        %506 = vrot.lane.b32.xlu0 %v497, 126
        %v507 = vpop.permute.xlu0 %506
        %508 = vrot.lane.b32.xlu0 %v501, 126
        %v509 = vpop.permute.xlu0 %508
        %vm510 = vcmask 1031168
        %v511 = vsel %vm510, %v503, %v505
        %v512 = vsel %vm510, %v505, %v507
        %v513 = vsel %vm510, %v507, %v509
        %v515 = vsel %vm191, %v495, 0
        %v517 = vsel %vm195, %v511, 0
        %v519 = vsel %vm195, %v512, 0
        %v521 = vsel %vm195, %v513, 0
        %523 = vmatprep.subr.mxu0 %v519
        %524 = vmatpush1.msra.mxu0 %v517
        %525 = vmatprep.subr.mxu0 0.0
        %526 = vmatpush1.msra.mxu0 0.0
        %527 = vmatprep.subr.mxu0 0.0
        %528 = vmatpush1.msra.mxu0 0.0
        %529 = vmatprep.subr.mxu0 0.0
        %530 = vmatpush1.msra.mxu0 0.0
        %531 = vmatprep.subr.mxu0 0.0
        %532 = vmatpush1.msra.mxu0 0.0
        %533 = vmatprep.subr.mxu0 0.0
        %534 = vmatpush1.msra.mxu0 0.0
        %535 = vmatprep.subr.mxu0 0.0
        %536 = vmatpush1.msra.mxu0 0.0
        %537 = vmatprep.subr.mxu0 0.0
        %538 = vmatpush1.msra.mxu0 0.0
        %539 = vmatprep.subr.mxu0 0.0
        %540 = vmatpush1.msra.mxu0 0.0
        %541 = vmatprep.subr.mxu0 0.0
        %542 = vmatpush1.msra.mxu0 0.0
        %543 = vmatprep.subr.mxu0 0.0
        %544 = vmatpush1.msra.mxu0 0.0
        %545 = vmatprep.subr.mxu0 0.0
        %546 = vmatpush1.msra.mxu0 0.0
        %547 = vmatprep.subr.mxu0 0.0
        %548 = vmatpush1.msra.mxu0 0.0
        %549 = vmatprep.subr.mxu0 0.0
        %550 = vmatpush1.msra.mxu0 0.0
        %551 = vmatprep.subr.mxu0 0.0
        %552 = vmatpush1.msra.mxu0 0.0
        %553 = vmatprep.subr.mxu0 0.0
        %554 = vmatpush1.msra.mxu0 0.0
        %555 = vmatprep.subr.mxu0 0.0
        %556 = vmatpush1.msra.mxu0 0.0
        %557 = vmatprep.subr.mxu0 0.0
        %558 = vmatpush1.msra.mxu0 0.0
        %559 = vmatprep.subr.mxu0 0.0
        %560 = vmatpush1.msra.mxu0 0.0
        %561 = vmatprep.subr.mxu0 0.0
        %562 = vmatpush1.msra.mxu0 0.0
        %563 = vmatprep.subr.mxu0 0.0
        %564 = vmatpush1.msra.mxu0 0.0
        %565 = vmatprep.subr.mxu0 0.0
        %566 = vmatpush1.msra.mxu0 0.0
        %567 = vmatprep.subr.mxu0 0.0
        %568 = vmatpush1.msra.mxu0 0.0
        %569 = vmatprep.subr.mxu0 0.0
        %570 = vmatpush1.msra.mxu0 0.0
        %571 = vmatprep.subr.mxu0 0.0
        %572 = vmatpush1.msra.mxu0 0.0
        %573 = vmatprep.subr.mxu0 0.0
        %574 = vmatpush1.msra.mxu0 0.0
        %575 = vmatprep.subr.mxu0 0.0
        %576 = vmatpush1.msra.mxu0 0.0
        %577 = vmatprep.subr.mxu0 0.0
        %578 = vmatpush1.msra.mxu0 0.0
        %579 = vmatprep.subr.mxu0 0.0
        %580 = vmatpush1.msra.mxu0 0.0
        %581 = vmatprep.subr.mxu0 0.0
        %582 = vmatpush1.msra.mxu0 0.0
        %583 = vmatprep.subr.mxu0 0.0
        %584 = vmatpush1.msra.mxu0 0.0
        %585 = vmatprep.subr.mxu0 0.0
        %586 = vmatpush1.msra.mxu0 0.0
        %587 = vmatprep.mubr.f32.mxu0 0.0
        %588 = vmatmul.mubr.f32.gmra.mrb[0].mxu0 %v515
        %v589 = vpop.f32.mrb[0].mxu0
        %v590 = vadd.f32 0.0, %v589
        %v591 = vpop.f32.mrb[0].mxu0
        %v592 = vadd.f32 0.0, %v591
        %593 = vdwg.mxu0
        %594 = vmatprep.subr.mxu0 0.0
        %595 = vmatpush1.msra.mxu0 %v521
        %596 = vmatprep.subr.mxu0 0.0
        %597 = vmatpush1.msra.mxu0 0.0
        %598 = vmatprep.subr.mxu0 0.0
        %599 = vmatpush1.msra.mxu0 0.0
        %600 = vmatprep.subr.mxu0 0.0
        %601 = vmatpush1.msra.mxu0 0.0
        %602 = vmatprep.subr.mxu0 0.0
        %603 = vmatpush1.msra.mxu0 0.0
        %604 = vmatprep.subr.mxu0 0.0
        %605 = vmatpush1.msra.mxu0 0.0
        %606 = vmatprep.subr.mxu0 0.0
        %607 = vmatpush1.msra.mxu0 0.0
        %608 = vmatprep.subr.mxu0 0.0
        %609 = vmatpush1.msra.mxu0 0.0
        %610 = vmatprep.subr.mxu0 0.0
        %611 = vmatpush1.msra.mxu0 0.0
        %612 = vmatprep.subr.mxu0 0.0
        %613 = vmatpush1.msra.mxu0 0.0
        %614 = vmatprep.subr.mxu0 0.0
        %615 = vmatpush1.msra.mxu0 0.0
        %616 = vmatprep.subr.mxu0 0.0
        %617 = vmatpush1.msra.mxu0 0.0
        %618 = vmatprep.subr.mxu0 0.0
        %619 = vmatpush1.msra.mxu0 0.0
        %620 = vmatprep.subr.mxu0 0.0
        %621 = vmatpush1.msra.mxu0 0.0
        %622 = vmatprep.subr.mxu0 0.0
        %623 = vmatpush1.msra.mxu0 0.0
        %624 = vmatprep.subr.mxu0 0.0
        %625 = vmatpush1.msra.mxu0 0.0
        %626 = vmatprep.subr.mxu0 0.0
        %627 = vmatpush1.msra.mxu0 0.0
        %628 = vmatprep.subr.mxu0 0.0
        %629 = vmatpush1.msra.mxu0 0.0
        %630 = vmatprep.subr.mxu0 0.0
        %631 = vmatpush1.msra.mxu0 0.0
        %632 = vmatprep.subr.mxu0 0.0
        %633 = vmatpush1.msra.mxu0 0.0
        %634 = vmatprep.subr.mxu0 0.0
        %635 = vmatpush1.msra.mxu0 0.0
        %636 = vmatprep.subr.mxu0 0.0
        %637 = vmatpush1.msra.mxu0 0.0
        %638 = vmatprep.subr.mxu0 0.0
        %639 = vmatpush1.msra.mxu0 0.0
        %640 = vmatprep.subr.mxu0 0.0
        %641 = vmatpush1.msra.mxu0 0.0
        %642 = vmatprep.subr.mxu0 0.0
        %643 = vmatpush1.msra.mxu0 0.0
        %644 = vmatprep.subr.mxu0 0.0
        %645 = vmatpush1.msra.mxu0 0.0
        %646 = vmatprep.subr.mxu0 0.0
        %647 = vmatpush1.msra.mxu0 0.0
        %648 = vmatprep.subr.mxu0 0.0
        %649 = vmatpush1.msra.mxu0 0.0
        %650 = vmatprep.subr.mxu0 0.0
        %651 = vmatpush1.msra.mxu0 0.0
        %652 = vmatprep.subr.mxu0 0.0
        %653 = vmatpush1.msra.mxu0 0.0
        %654 = vmatprep.subr.mxu0 0.0
        %655 = vmatpush1.msra.mxu0 0.0
        %656 = vmatprep.subr.mxu0 0.0
        %657 = vmatpush1.msra.mxu0 0.0
        %658 = vmatprep.mubr.f32.mxu0 0.0
        %659 = vmatmul.mubr.f32.gmra.mrb[0].mxu0 %v515
        %v660 = vpop.f32.mrb[0].mxu0
        %v661 = vadd.f32 0.0, %v660
        %v662 = vpop.f32.mrb[0].mxu0
        %663 = vdwg.mxu0
        %v664 = vadd.f32 %v420, %v590
        %v665 = vadd.f32 %v422, %v592
        %v666 = vadd.f32 %v491, %v661
        %s667 = scalar_lea.vmem %s1, 24
        %v668 = vld [vmem:[%s667] sm:$0xff]
        %v669 = vld [vmem:[%s168] sm:$0xff]
        %v670 = vld [vmem:[%s168 + $0x8] sm:$0xff]
        %v673 = vcombine.high %v669, %v669
        %v674 = vcombine.high %v670, %v670
        %675 = vrot.lane.b32.xlu0 %v669, 110
        %v676 = vpop.permute.xlu0 %675
        %677 = vrot.lane.b32.xlu0 %v673, 110
        %v678 = vpop.permute.xlu0 %677
        %679 = vrot.lane.b32.xlu0 %v670, 110
        %v680 = vpop.permute.xlu0 %679
        %681 = vrot.lane.b32.xlu0 %v674, 110
        %v682 = vpop.permute.xlu0 %681
        %vm683 = vcmask 900096
        %v684 = vsel %vm683, %v676, %v678
        %v685 = vsel %vm683, %v678, %v680
        %v686 = vsel %vm683, %v680, %v682
        %v688 = vsel %vm191, %v668, 0
        %v690 = vsel %vm195, %v684, 0
        %v692 = vsel %vm195, %v685, 0
        %v694 = vsel %vm195, %v686, 0
        %696 = vmatprep.subr.mxu0 %v692
        %697 = vmatpush1.msra.mxu0 %v690
        %698 = vmatprep.subr.mxu0 0.0
        %699 = vmatpush1.msra.mxu0 0.0
        %700 = vmatprep.subr.mxu0 0.0
        %701 = vmatpush1.msra.mxu0 0.0
        %702 = vmatprep.subr.mxu0 0.0
        %703 = vmatpush1.msra.mxu0 0.0
        %704 = vmatprep.subr.mxu0 0.0
        %705 = vmatpush1.msra.mxu0 0.0
        %706 = vmatprep.subr.mxu0 0.0
        %707 = vmatpush1.msra.mxu0 0.0
        %708 = vmatprep.subr.mxu0 0.0
        %709 = vmatpush1.msra.mxu0 0.0
        %710 = vmatprep.subr.mxu0 0.0
        %711 = vmatpush1.msra.mxu0 0.0
        %712 = vmatprep.subr.mxu0 0.0
        %713 = vmatpush1.msra.mxu0 0.0
        %714 = vmatprep.subr.mxu0 0.0
        %715 = vmatpush1.msra.mxu0 0.0
        %716 = vmatprep.subr.mxu0 0.0
        %717 = vmatpush1.msra.mxu0 0.0
        %718 = vmatprep.subr.mxu0 0.0
        %719 = vmatpush1.msra.mxu0 0.0
        %720 = vmatprep.subr.mxu0 0.0
        %721 = vmatpush1.msra.mxu0 0.0
        %722 = vmatprep.subr.mxu0 0.0
        %723 = vmatpush1.msra.mxu0 0.0
        %724 = vmatprep.subr.mxu0 0.0
        %725 = vmatpush1.msra.mxu0 0.0
        %726 = vmatprep.subr.mxu0 0.0
        %727 = vmatpush1.msra.mxu0 0.0
        %728 = vmatprep.subr.mxu0 0.0
        %729 = vmatpush1.msra.mxu0 0.0
        %730 = vmatprep.subr.mxu0 0.0
        %731 = vmatpush1.msra.mxu0 0.0
        %732 = vmatprep.subr.mxu0 0.0
        %733 = vmatpush1.msra.mxu0 0.0
        %734 = vmatprep.subr.mxu0 0.0
        %735 = vmatpush1.msra.mxu0 0.0
        %736 = vmatprep.subr.mxu0 0.0
        %737 = vmatpush1.msra.mxu0 0.0
        %738 = vmatprep.subr.mxu0 0.0
        %739 = vmatpush1.msra.mxu0 0.0
        %740 = vmatprep.subr.mxu0 0.0
        %741 = vmatpush1.msra.mxu0 0.0
        %742 = vmatprep.subr.mxu0 0.0
        %743 = vmatpush1.msra.mxu0 0.0
        %744 = vmatprep.subr.mxu0 0.0
        %745 = vmatpush1.msra.mxu0 0.0
        %746 = vmatprep.subr.mxu0 0.0
        %747 = vmatpush1.msra.mxu0 0.0
        %748 = vmatprep.subr.mxu0 0.0
        %749 = vmatpush1.msra.mxu0 0.0
        %750 = vmatprep.subr.mxu0 0.0
        %751 = vmatpush1.msra.mxu0 0.0
        %752 = vmatprep.subr.mxu0 0.0
        %753 = vmatpush1.msra.mxu0 0.0
        %754 = vmatprep.subr.mxu0 0.0
        %755 = vmatpush1.msra.mxu0 0.0
        %756 = vmatprep.subr.mxu0 0.0
        %757 = vmatpush1.msra.mxu0 0.0
        %758 = vmatprep.subr.mxu0 0.0
        %759 = vmatpush1.msra.mxu0 0.0
        %760 = vmatprep.mubr.f32.mxu0 0.0
        %761 = vmatmul.mubr.f32.gmra.mrb[0].mxu0 %v688
        %v762 = vpop.f32.mrb[0].mxu0
        %v763 = vadd.f32 0.0, %v762
        %v764 = vpop.f32.mrb[0].mxu0
        %v765 = vadd.f32 0.0, %v764
        %766 = vdwg.mxu0
        %767 = vmatprep.subr.mxu0 0.0
        %768 = vmatpush1.msra.mxu0 %v694
        %769 = vmatprep.subr.mxu0 0.0
        %770 = vmatpush1.msra.mxu0 0.0
        %771 = vmatprep.subr.mxu0 0.0
        %772 = vmatpush1.msra.mxu0 0.0
        %773 = vmatprep.subr.mxu0 0.0
        %774 = vmatpush1.msra.mxu0 0.0
        %775 = vmatprep.subr.mxu0 0.0
        %776 = vmatpush1.msra.mxu0 0.0
        %777 = vmatprep.subr.mxu0 0.0
        %778 = vmatpush1.msra.mxu0 0.0
        %779 = vmatprep.subr.mxu0 0.0
        %780 = vmatpush1.msra.mxu0 0.0
        %781 = vmatprep.subr.mxu0 0.0
        %782 = vmatpush1.msra.mxu0 0.0
        %783 = vmatprep.subr.mxu0 0.0
        %784 = vmatpush1.msra.mxu0 0.0
        %785 = vmatprep.subr.mxu0 0.0
        %786 = vmatpush1.msra.mxu0 0.0
        %787 = vmatprep.subr.mxu0 0.0
        %788 = vmatpush1.msra.mxu0 0.0
        %789 = vmatprep.subr.mxu0 0.0
        %790 = vmatpush1.msra.mxu0 0.0
        %791 = vmatprep.subr.mxu0 0.0
        %792 = vmatpush1.msra.mxu0 0.0
        %793 = vmatprep.subr.mxu0 0.0
        %794 = vmatpush1.msra.mxu0 0.0
        %795 = vmatprep.subr.mxu0 0.0
        %796 = vmatpush1.msra.mxu0 0.0
        %797 = vmatprep.subr.mxu0 0.0
        %798 = vmatpush1.msra.mxu0 0.0
        %799 = vmatprep.subr.mxu0 0.0
        %800 = vmatpush1.msra.mxu0 0.0
        %801 = vmatprep.subr.mxu0 0.0
        %802 = vmatpush1.msra.mxu0 0.0
        %803 = vmatprep.subr.mxu0 0.0
        %804 = vmatpush1.msra.mxu0 0.0
        %805 = vmatprep.subr.mxu0 0.0
        %806 = vmatpush1.msra.mxu0 0.0
        %807 = vmatprep.subr.mxu0 0.0
        %808 = vmatpush1.msra.mxu0 0.0
        %809 = vmatprep.subr.mxu0 0.0
        %810 = vmatpush1.msra.mxu0 0.0
        %811 = vmatprep.subr.mxu0 0.0
        %812 = vmatpush1.msra.mxu0 0.0
        %813 = vmatprep.subr.mxu0 0.0
        %814 = vmatpush1.msra.mxu0 0.0
        %815 = vmatprep.subr.mxu0 0.0
        %816 = vmatpush1.msra.mxu0 0.0
        %817 = vmatprep.subr.mxu0 0.0
        %818 = vmatpush1.msra.mxu0 0.0
        %819 = vmatprep.subr.mxu0 0.0
        %820 = vmatpush1.msra.mxu0 0.0
        %821 = vmatprep.subr.mxu0 0.0
        %822 = vmatpush1.msra.mxu0 0.0
        %823 = vmatprep.subr.mxu0 0.0
        %824 = vmatpush1.msra.mxu0 0.0
        %825 = vmatprep.subr.mxu0 0.0
        %826 = vmatpush1.msra.mxu0 0.0
        %827 = vmatprep.subr.mxu0 0.0
        %828 = vmatpush1.msra.mxu0 0.0
        %829 = vmatprep.subr.mxu0 0.0
        %830 = vmatpush1.msra.mxu0 0.0
        %831 = vmatprep.mubr.f32.mxu0 0.0
        %832 = vmatmul.mubr.f32.gmra.mrb[0].mxu0 %v688
        %v833 = vpop.f32.mrb[0].mxu0
        %v834 = vadd.f32 0.0, %v833
        %v835 = vpop.f32.mrb[0].mxu0
        %836 = vdwg.mxu0
        %v837 = vadd.f32 %v664, %v763
        %v838 = vadd.f32 %v665, %v765
        %v839 = vadd.f32 %v666, %v834
        %s840 = scalar_lea.vmem %s1, 32
        %v841 = vld [vmem:[%s840] sm:$0xff]
        %v842 = vld [vmem:[%s168] sm:$0xff]
        %v843 = vld [vmem:[%s168 + $0x8] sm:$0xff]
        %v846 = vcombine.high %v842, %v842
        %v847 = vcombine.high %v843, %v843
        %848 = vrot.lane.b32.xlu0 %v842, 109
        %v849 = vpop.permute.xlu0 %848
        %850 = vrot.lane.b32.xlu0 %v846, 109
        %v851 = vpop.permute.xlu0 %850
        %852 = vrot.lane.b32.xlu0 %v843, 109
        %v853 = vpop.permute.xlu0 %852
        %854 = vrot.lane.b32.xlu0 %v847, 109
        %v855 = vpop.permute.xlu0 %854
        %vm856 = vcmask 891904
        %v857 = vsel %vm856, %v849, %v851
        %v858 = vsel %vm856, %v851, %v853
        %v859 = vsel %vm856, %v853, %v855
        %v861 = vsel %vm191, %v841, 0
        %v863 = vsel %vm195, %v857, 0
        %v865 = vsel %vm195, %v858, 0
        %v867 = vsel %vm195, %v859, 0
        %869 = vmatprep.subr.mxu0 %v865
        %870 = vmatpush1.msra.mxu0 %v863
        %871 = vmatprep.subr.mxu0 0.0
        %872 = vmatpush1.msra.mxu0 0.0
        %873 = vmatprep.subr.mxu0 0.0
        %874 = vmatpush1.msra.mxu0 0.0
        %875 = vmatprep.subr.mxu0 0.0
        %876 = vmatpush1.msra.mxu0 0.0
        %877 = vmatprep.subr.mxu0 0.0
        %878 = vmatpush1.msra.mxu0 0.0
        %879 = vmatprep.subr.mxu0 0.0
        %880 = vmatpush1.msra.mxu0 0.0
        %881 = vmatprep.subr.mxu0 0.0
        %882 = vmatpush1.msra.mxu0 0.0
        %883 = vmatprep.subr.mxu0 0.0
        %884 = vmatpush1.msra.mxu0 0.0
        %885 = vmatprep.subr.mxu0 0.0
        %886 = vmatpush1.msra.mxu0 0.0
        %887 = vmatprep.subr.mxu0 0.0
        %888 = vmatpush1.msra.mxu0 0.0
        %889 = vmatprep.subr.mxu0 0.0
        %890 = vmatpush1.msra.mxu0 0.0
        %891 = vmatprep.subr.mxu0 0.0
        %892 = vmatpush1.msra.mxu0 0.0
        %893 = vmatprep.subr.mxu0 0.0
        %894 = vmatpush1.msra.mxu0 0.0
        %895 = vmatprep.subr.mxu0 0.0
        %896 = vmatpush1.msra.mxu0 0.0
        %897 = vmatprep.subr.mxu0 0.0
        %898 = vmatpush1.msra.mxu0 0.0
        %899 = vmatprep.subr.mxu0 0.0
        %900 = vmatpush1.msra.mxu0 0.0
        %901 = vmatprep.subr.mxu0 0.0
        %902 = vmatpush1.msra.mxu0 0.0
        %903 = vmatprep.subr.mxu0 0.0
        %904 = vmatpush1.msra.mxu0 0.0
        %905 = vmatprep.subr.mxu0 0.0
        %906 = vmatpush1.msra.mxu0 0.0
        %907 = vmatprep.subr.mxu0 0.0
        %908 = vmatpush1.msra.mxu0 0.0
        %909 = vmatprep.subr.mxu0 0.0
        %910 = vmatpush1.msra.mxu0 0.0
        %911 = vmatprep.subr.mxu0 0.0
        %912 = vmatpush1.msra.mxu0 0.0
        %913 = vmatprep.subr.mxu0 0.0
        %914 = vmatpush1.msra.mxu0 0.0
        %915 = vmatprep.subr.mxu0 0.0
        %916 = vmatpush1.msra.mxu0 0.0
        %917 = vmatprep.subr.mxu0 0.0
        %918 = vmatpush1.msra.mxu0 0.0
        %919 = vmatprep.subr.mxu0 0.0
        %920 = vmatpush1.msra.mxu0 0.0
        %921 = vmatprep.subr.mxu0 0.0
        %922 = vmatpush1.msra.mxu0 0.0
        %923 = vmatprep.subr.mxu0 0.0
        %924 = vmatpush1.msra.mxu0 0.0
        %925 = vmatprep.subr.mxu0 0.0
        %926 = vmatpush1.msra.mxu0 0.0
        %927 = vmatprep.subr.mxu0 0.0
        %928 = vmatpush1.msra.mxu0 0.0
        %929 = vmatprep.subr.mxu0 0.0
        %930 = vmatpush1.msra.mxu0 0.0
        %931 = vmatprep.subr.mxu0 0.0
        %932 = vmatpush1.msra.mxu0 0.0
        %933 = vmatprep.mubr.f32.mxu0 0.0
        %934 = vmatmul.mubr.f32.gmra.mrb[0].mxu0 %v861
        %v935 = vpop.f32.mrb[0].mxu0
        %v936 = vadd.f32 0.0, %v935
        %v937 = vpop.f32.mrb[0].mxu0
        %v938 = vadd.f32 0.0, %v937
        %939 = vdwg.mxu0
        %940 = vmatprep.subr.mxu0 0.0
        %941 = vmatpush1.msra.mxu0 %v867
        %942 = vmatprep.subr.mxu0 0.0
        %943 = vmatpush1.msra.mxu0 0.0
        %944 = vmatprep.subr.mxu0 0.0
        %945 = vmatpush1.msra.mxu0 0.0
        %946 = vmatprep.subr.mxu0 0.0
        %947 = vmatpush1.msra.mxu0 0.0
        %948 = vmatprep.subr.mxu0 0.0
        %949 = vmatpush1.msra.mxu0 0.0
        %950 = vmatprep.subr.mxu0 0.0
        %951 = vmatpush1.msra.mxu0 0.0
        %952 = vmatprep.subr.mxu0 0.0
        %953 = vmatpush1.msra.mxu0 0.0
        %954 = vmatprep.subr.mxu0 0.0
        %955 = vmatpush1.msra.mxu0 0.0
        %956 = vmatprep.subr.mxu0 0.0
        %957 = vmatpush1.msra.mxu0 0.0
        %958 = vmatprep.subr.mxu0 0.0
        %959 = vmatpush1.msra.mxu0 0.0
        %960 = vmatprep.subr.mxu0 0.0
        %961 = vmatpush1.msra.mxu0 0.0
        %962 = vmatprep.subr.mxu0 0.0
        %963 = vmatpush1.msra.mxu0 0.0
        %964 = vmatprep.subr.mxu0 0.0
        %965 = vmatpush1.msra.mxu0 0.0
        %966 = vmatprep.subr.mxu0 0.0
        %967 = vmatpush1.msra.mxu0 0.0
        %968 = vmatprep.subr.mxu0 0.0
        %969 = vmatpush1.msra.mxu0 0.0
        %970 = vmatprep.subr.mxu0 0.0
        %971 = vmatpush1.msra.mxu0 0.0
        %972 = vmatprep.subr.mxu0 0.0
        %973 = vmatpush1.msra.mxu0 0.0
        %974 = vmatprep.subr.mxu0 0.0
        %975 = vmatpush1.msra.mxu0 0.0
        %976 = vmatprep.subr.mxu0 0.0
        %977 = vmatpush1.msra.mxu0 0.0
        %978 = vmatprep.subr.mxu0 0.0
        %979 = vmatpush1.msra.mxu0 0.0
        %980 = vmatprep.subr.mxu0 0.0
        %981 = vmatpush1.msra.mxu0 0.0
        %982 = vmatprep.subr.mxu0 0.0
        %983 = vmatpush1.msra.mxu0 0.0
        %984 = vmatprep.subr.mxu0 0.0
        %985 = vmatpush1.msra.mxu0 0.0
        %986 = vmatprep.subr.mxu0 0.0
        %987 = vmatpush1.msra.mxu0 0.0
        %988 = vmatprep.subr.mxu0 0.0
        %989 = vmatpush1.msra.mxu0 0.0
        %990 = vmatprep.subr.mxu0 0.0
        %991 = vmatpush1.msra.mxu0 0.0
        %992 = vmatprep.subr.mxu0 0.0
        %993 = vmatpush1.msra.mxu0 0.0
        %994 = vmatprep.subr.mxu0 0.0
        %995 = vmatpush1.msra.mxu0 0.0
        %996 = vmatprep.subr.mxu0 0.0
        %997 = vmatpush1.msra.mxu0 0.0
        %998 = vmatprep.subr.mxu0 0.0
        %999 = vmatpush1.msra.mxu0 0.0
        %1000 = vmatprep.subr.mxu0 0.0
        %1001 = vmatpush1.msra.mxu0 0.0
        %1002 = vmatprep.subr.mxu0 0.0
        %1003 = vmatpush1.msra.mxu0 0.0
        %1004 = vmatprep.mubr.f32.mxu0 0.0
        %1005 = vmatmul.mubr.f32.gmra.mrb[0].mxu0 %v861
        %v1006 = vpop.f32.mrb[0].mxu0
        %v1007 = vadd.f32 0.0, %v1006
        %v1008 = vpop.f32.mrb[0].mxu0
        %1009 = vdwg.mxu0
        %v1010 = vadd.f32 %v837, %v936
        %v1011 = vadd.f32 %v838, %v938
        %v1012 = vadd.f32 %v839, %v1007
        %s1013 = scalar_lea.vmem %s1, 40
        %v1014 = vld [vmem:[%s1013] sm:$0xff]
        %v1015 = vld [vmem:[%s168] sm:$0xff]
        %v1016 = vld [vmem:[%s168 + $0x8] sm:$0xff]
        %v1019 = vcombine.high %v1015, %v1015
        %v1020 = vcombine.high %v1016, %v1016
        %1021 = vrot.lane.b32.xlu0 %v1015, 108
        %v1022 = vpop.permute.xlu0 %1021
        %1023 = vrot.lane.b32.xlu0 %v1019, 108
        %v1024 = vpop.permute.xlu0 %1023
        %1025 = vrot.lane.b32.xlu0 %v1016, 108
        %v1026 = vpop.permute.xlu0 %1025
        %1027 = vrot.lane.b32.xlu0 %v1020, 108
        %v1028 = vpop.permute.xlu0 %1027
        %vm1029 = vcmask 883712
        %v1030 = vsel %vm1029, %v1022, %v1024
        %v1031 = vsel %vm1029, %v1024, %v1026
        %v1032 = vsel %vm1029, %v1026, %v1028
        %v1034 = vsel %vm191, %v1014, 0
        %v1036 = vsel %vm195, %v1030, 0
        %v1038 = vsel %vm195, %v1031, 0
        %v1040 = vsel %vm195, %v1032, 0
        %1042 = vmatprep.subr.mxu0 %v1038
        %1043 = vmatpush1.msra.mxu0 %v1036
        %1044 = vmatprep.subr.mxu0 0.0
        %1045 = vmatpush1.msra.mxu0 0.0
        %1046 = vmatprep.subr.mxu0 0.0
        %1047 = vmatpush1.msra.mxu0 0.0
        %1048 = vmatprep.subr.mxu0 0.0
        %1049 = vmatpush1.msra.mxu0 0.0
        %1050 = vmatprep.subr.mxu0 0.0
        %1051 = vmatpush1.msra.mxu0 0.0
        %1052 = vmatprep.subr.mxu0 0.0
        %1053 = vmatpush1.msra.mxu0 0.0
        %1054 = vmatprep.subr.mxu0 0.0
        %1055 = vmatpush1.msra.mxu0 0.0
        %1056 = vmatprep.subr.mxu0 0.0
        %1057 = vmatpush1.msra.mxu0 0.0
        %1058 = vmatprep.subr.mxu0 0.0
        %1059 = vmatpush1.msra.mxu0 0.0
        %1060 = vmatprep.subr.mxu0 0.0
        %1061 = vmatpush1.msra.mxu0 0.0
        %1062 = vmatprep.subr.mxu0 0.0
        %1063 = vmatpush1.msra.mxu0 0.0
        %1064 = vmatprep.subr.mxu0 0.0
        %1065 = vmatpush1.msra.mxu0 0.0
        %1066 = vmatprep.subr.mxu0 0.0
        %1067 = vmatpush1.msra.mxu0 0.0
        %1068 = vmatprep.subr.mxu0 0.0
        %1069 = vmatpush1.msra.mxu0 0.0
        %1070 = vmatprep.subr.mxu0 0.0
        %1071 = vmatpush1.msra.mxu0 0.0
        %1072 = vmatprep.subr.mxu0 0.0
        %1073 = vmatpush1.msra.mxu0 0.0
        %1074 = vmatprep.subr.mxu0 0.0
        %1075 = vmatpush1.msra.mxu0 0.0
        %1076 = vmatprep.subr.mxu0 0.0
        %1077 = vmatpush1.msra.mxu0 0.0
        %1078 = vmatprep.subr.mxu0 0.0
        %1079 = vmatpush1.msra.mxu0 0.0
        %1080 = vmatprep.subr.mxu0 0.0
        %1081 = vmatpush1.msra.mxu0 0.0
        %1082 = vmatprep.subr.mxu0 0.0
        %1083 = vmatpush1.msra.mxu0 0.0
        %1084 = vmatprep.subr.mxu0 0.0
        %1085 = vmatpush1.msra.mxu0 0.0
        %1086 = vmatprep.subr.mxu0 0.0
        %1087 = vmatpush1.msra.mxu0 0.0
        %1088 = vmatprep.subr.mxu0 0.0
        %1089 = vmatpush1.msra.mxu0 0.0
        %1090 = vmatprep.subr.mxu0 0.0
        %1091 = vmatpush1.msra.mxu0 0.0
        %1092 = vmatprep.subr.mxu0 0.0
        %1093 = vmatpush1.msra.mxu0 0.0
        %1094 = vmatprep.subr.mxu0 0.0
        %1095 = vmatpush1.msra.mxu0 0.0
        %1096 = vmatprep.subr.mxu0 0.0
        %1097 = vmatpush1.msra.mxu0 0.0
        %1098 = vmatprep.subr.mxu0 0.0
        %1099 = vmatpush1.msra.mxu0 0.0
        %1100 = vmatprep.subr.mxu0 0.0
        %1101 = vmatpush1.msra.mxu0 0.0
        %1102 = vmatprep.subr.mxu0 0.0
        %1103 = vmatpush1.msra.mxu0 0.0
        %1104 = vmatprep.subr.mxu0 0.0
        %1105 = vmatpush1.msra.mxu0 0.0
        %1106 = vmatprep.mubr.f32.mxu0 0.0
        %1107 = vmatmul.mubr.f32.gmra.mrb[0].mxu0 %v1034
        %v1108 = vpop.f32.mrb[0].mxu0
        %v1109 = vadd.f32 0.0, %v1108
        %v1110 = vpop.f32.mrb[0].mxu0
        %v1111 = vadd.f32 0.0, %v1110
        %1112 = vdwg.mxu0
        %1113 = vmatprep.subr.mxu0 0.0
        %1114 = vmatpush1.msra.mxu0 %v1040
        %1115 = vmatprep.subr.mxu0 0.0
        %1116 = vmatpush1.msra.mxu0 0.0
        %1117 = vmatprep.subr.mxu0 0.0
        %1118 = vmatpush1.msra.mxu0 0.0
        %1119 = vmatprep.subr.mxu0 0.0
        %1120 = vmatpush1.msra.mxu0 0.0
        %1121 = vmatprep.subr.mxu0 0.0
        %1122 = vmatpush1.msra.mxu0 0.0
        %1123 = vmatprep.subr.mxu0 0.0
        %1124 = vmatpush1.msra.mxu0 0.0
        %1125 = vmatprep.subr.mxu0 0.0
        %1126 = vmatpush1.msra.mxu0 0.0
        %1127 = vmatprep.subr.mxu0 0.0
        %1128 = vmatpush1.msra.mxu0 0.0
        %1129 = vmatprep.subr.mxu0 0.0
        %1130 = vmatpush1.msra.mxu0 0.0
        %1131 = vmatprep.subr.mxu0 0.0
        %1132 = vmatpush1.msra.mxu0 0.0
        %1133 = vmatprep.subr.mxu0 0.0
        %1134 = vmatpush1.msra.mxu0 0.0
        %1135 = vmatprep.subr.mxu0 0.0
        %1136 = vmatpush1.msra.mxu0 0.0
        %1137 = vmatprep.subr.mxu0 0.0
        %1138 = vmatpush1.msra.mxu0 0.0
        %1139 = vmatprep.subr.mxu0 0.0
        %1140 = vmatpush1.msra.mxu0 0.0
        %1141 = vmatprep.subr.mxu0 0.0
        %1142 = vmatpush1.msra.mxu0 0.0
        %1143 = vmatprep.subr.mxu0 0.0
        %1144 = vmatpush1.msra.mxu0 0.0
        %1145 = vmatprep.subr.mxu0 0.0
        %1146 = vmatpush1.msra.mxu0 0.0
        %1147 = vmatprep.subr.mxu0 0.0
        %1148 = vmatpush1.msra.mxu0 0.0
        %1149 = vmatprep.subr.mxu0 0.0
        %1150 = vmatpush1.msra.mxu0 0.0
        %1151 = vmatprep.subr.mxu0 0.0
        %1152 = vmatpush1.msra.mxu0 0.0
        %1153 = vmatprep.subr.mxu0 0.0
        %1154 = vmatpush1.msra.mxu0 0.0
        %1155 = vmatprep.subr.mxu0 0.0
        %1156 = vmatpush1.msra.mxu0 0.0
        %1157 = vmatprep.subr.mxu0 0.0
        %1158 = vmatpush1.msra.mxu0 0.0
        %1159 = vmatprep.subr.mxu0 0.0
        %1160 = vmatpush1.msra.mxu0 0.0
        %1161 = vmatprep.subr.mxu0 0.0
        %1162 = vmatpush1.msra.mxu0 0.0
        %1163 = vmatprep.subr.mxu0 0.0
        %1164 = vmatpush1.msra.mxu0 0.0
        %1165 = vmatprep.subr.mxu0 0.0
        %1166 = vmatpush1.msra.mxu0 0.0
        %1167 = vmatprep.subr.mxu0 0.0
        %1168 = vmatpush1.msra.mxu0 0.0
        %1169 = vmatprep.subr.mxu0 0.0
        %1170 = vmatpush1.msra.mxu0 0.0
        %1171 = vmatprep.subr.mxu0 0.0
        %1172 = vmatpush1.msra.mxu0 0.0
        %1173 = vmatprep.subr.mxu0 0.0
        %1174 = vmatpush1.msra.mxu0 0.0
        %1175 = vmatprep.subr.mxu0 0.0
        %1176 = vmatpush1.msra.mxu0 0.0
        %1177 = vmatprep.mubr.f32.mxu0 0.0
        %1178 = vmatmul.mubr.f32.gmra.mrb[0].mxu0 %v1034
        %v1179 = vpop.f32.mrb[0].mxu0
        %v1180 = vadd.f32 0.0, %v1179
        %v1181 = vpop.f32.mrb[0].mxu0
        %1182 = vdwg.mxu0
        %v1183 = vadd.f32 %v1010, %v1109
        %v1184 = vadd.f32 %v1011, %v1111
        %v1185 = vadd.f32 %v1012, %v1180
        %s1186 = scalar_lea.vmem %s1, 48
        %v1187 = vld [vmem:[%s1186] sm:$0xff]
        %v1188 = vld [vmem:[%s168] sm:$0xff]
        %v1189 = vld [vmem:[%s168 + $0x8] sm:$0xff]
        %v1192 = vcombine.high %v1188, %v1188
        %v1193 = vcombine.high %v1189, %v1189
        %1194 = vrot.lane.b32.xlu0 %v1188, 92
        %v1195 = vpop.permute.xlu0 %1194
        %1196 = vrot.lane.b32.xlu0 %v1192, 92
        %v1197 = vpop.permute.xlu0 %1196
        %1198 = vrot.lane.b32.xlu0 %v1189, 92
        %v1199 = vpop.permute.xlu0 %1198
        %1200 = vrot.lane.b32.xlu0 %v1193, 92
        %v1201 = vpop.permute.xlu0 %1200
        %vm1202 = vcmask 752640
        %v1203 = vsel %vm1202, %v1195, %v1197
        %v1204 = vsel %vm1202, %v1197, %v1199
        %v1205 = vsel %vm1202, %v1199, %v1201
        %v1207 = vsel %vm191, %v1187, 0
        %v1209 = vsel %vm195, %v1203, 0
        %v1211 = vsel %vm195, %v1204, 0
        %v1213 = vsel %vm195, %v1205, 0
        %1215 = vmatprep.subr.mxu0 %v1211
        %1216 = vmatpush1.msra.mxu0 %v1209
        %1217 = vmatprep.subr.mxu0 0.0
        %1218 = vmatpush1.msra.mxu0 0.0
        %1219 = vmatprep.subr.mxu0 0.0
        %1220 = vmatpush1.msra.mxu0 0.0
        %1221 = vmatprep.subr.mxu0 0.0
        %1222 = vmatpush1.msra.mxu0 0.0
        %1223 = vmatprep.subr.mxu0 0.0
        %1224 = vmatpush1.msra.mxu0 0.0
        %1225 = vmatprep.subr.mxu0 0.0
        %1226 = vmatpush1.msra.mxu0 0.0
        %1227 = vmatprep.subr.mxu0 0.0
        %1228 = vmatpush1.msra.mxu0 0.0
        %1229 = vmatprep.subr.mxu0 0.0
        %1230 = vmatpush1.msra.mxu0 0.0
        %1231 = vmatprep.subr.mxu0 0.0
        %1232 = vmatpush1.msra.mxu0 0.0
        %1233 = vmatprep.subr.mxu0 0.0
        %1234 = vmatpush1.msra.mxu0 0.0
        %1235 = vmatprep.subr.mxu0 0.0
        %1236 = vmatpush1.msra.mxu0 0.0
        %1237 = vmatprep.subr.mxu0 0.0
        %1238 = vmatpush1.msra.mxu0 0.0
        %1239 = vmatprep.subr.mxu0 0.0
        %1240 = vmatpush1.msra.mxu0 0.0
        %1241 = vmatprep.subr.mxu0 0.0
        %1242 = vmatpush1.msra.mxu0 0.0
        %1243 = vmatprep.subr.mxu0 0.0
        %1244 = vmatpush1.msra.mxu0 0.0
        %1245 = vmatprep.subr.mxu0 0.0
        %1246 = vmatpush1.msra.mxu0 0.0
        %1247 = vmatprep.subr.mxu0 0.0
        %1248 = vmatpush1.msra.mxu0 0.0
        %1249 = vmatprep.subr.mxu0 0.0
        %1250 = vmatpush1.msra.mxu0 0.0
        %1251 = vmatprep.subr.mxu0 0.0
        %1252 = vmatpush1.msra.mxu0 0.0
        %1253 = vmatprep.subr.mxu0 0.0
        %1254 = vmatpush1.msra.mxu0 0.0
        %1255 = vmatprep.subr.mxu0 0.0
        %1256 = vmatpush1.msra.mxu0 0.0
        %1257 = vmatprep.subr.mxu0 0.0
        %1258 = vmatpush1.msra.mxu0 0.0
        %1259 = vmatprep.subr.mxu0 0.0
        %1260 = vmatpush1.msra.mxu0 0.0
        %1261 = vmatprep.subr.mxu0 0.0
        %1262 = vmatpush1.msra.mxu0 0.0
        %1263 = vmatprep.subr.mxu0 0.0
        %1264 = vmatpush1.msra.mxu0 0.0
        %1265 = vmatprep.subr.mxu0 0.0
        %1266 = vmatpush1.msra.mxu0 0.0
        %1267 = vmatprep.subr.mxu0 0.0
        %1268 = vmatpush1.msra.mxu0 0.0
        %1269 = vmatprep.subr.mxu0 0.0
        %1270 = vmatpush1.msra.mxu0 0.0
        %1271 = vmatprep.subr.mxu0 0.0
        %1272 = vmatpush1.msra.mxu0 0.0
        %1273 = vmatprep.subr.mxu0 0.0
        %1274 = vmatpush1.msra.mxu0 0.0
        %1275 = vmatprep.subr.mxu0 0.0
        %1276 = vmatpush1.msra.mxu0 0.0
        %1277 = vmatprep.subr.mxu0 0.0
        %1278 = vmatpush1.msra.mxu0 0.0
        %1279 = vmatprep.mubr.f32.mxu0 0.0
        %1280 = vmatmul.mubr.f32.gmra.mrb[0].mxu0 %v1207
        %v1281 = vpop.f32.mrb[0].mxu0
        %v1282 = vadd.f32 0.0, %v1281
        %v1283 = vpop.f32.mrb[0].mxu0
        %v1284 = vadd.f32 0.0, %v1283
        %1285 = vdwg.mxu0
        %1286 = vmatprep.subr.mxu0 0.0
        %1287 = vmatpush1.msra.mxu0 %v1213
        %1288 = vmatprep.subr.mxu0 0.0
        %1289 = vmatpush1.msra.mxu0 0.0
        %1290 = vmatprep.subr.mxu0 0.0
        %1291 = vmatpush1.msra.mxu0 0.0
        %1292 = vmatprep.subr.mxu0 0.0
        %1293 = vmatpush1.msra.mxu0 0.0
        %1294 = vmatprep.subr.mxu0 0.0
        %1295 = vmatpush1.msra.mxu0 0.0
        %1296 = vmatprep.subr.mxu0 0.0
        %1297 = vmatpush1.msra.mxu0 0.0
        %1298 = vmatprep.subr.mxu0 0.0
        %1299 = vmatpush1.msra.mxu0 0.0
        %1300 = vmatprep.subr.mxu0 0.0
        %1301 = vmatpush1.msra.mxu0 0.0
        %1302 = vmatprep.subr.mxu0 0.0
        %1303 = vmatpush1.msra.mxu0 0.0
        %1304 = vmatprep.subr.mxu0 0.0
        %1305 = vmatpush1.msra.mxu0 0.0
        %1306 = vmatprep.subr.mxu0 0.0
        %1307 = vmatpush1.msra.mxu0 0.0
        %1308 = vmatprep.subr.mxu0 0.0
        %1309 = vmatpush1.msra.mxu0 0.0
        %1310 = vmatprep.subr.mxu0 0.0
        %1311 = vmatpush1.msra.mxu0 0.0
        %1312 = vmatprep.subr.mxu0 0.0
        %1313 = vmatpush1.msra.mxu0 0.0
        %1314 = vmatprep.subr.mxu0 0.0
        %1315 = vmatpush1.msra.mxu0 0.0
        %1316 = vmatprep.subr.mxu0 0.0
        %1317 = vmatpush1.msra.mxu0 0.0
        %1318 = vmatprep.subr.mxu0 0.0
        %1319 = vmatpush1.msra.mxu0 0.0
        %1320 = vmatprep.subr.mxu0 0.0
        %1321 = vmatpush1.msra.mxu0 0.0
        %1322 = vmatprep.subr.mxu0 0.0
        %1323 = vmatpush1.msra.mxu0 0.0
        %1324 = vmatprep.subr.mxu0 0.0
        %1325 = vmatpush1.msra.mxu0 0.0
        %1326 = vmatprep.subr.mxu0 0.0
        %1327 = vmatpush1.msra.mxu0 0.0
        %1328 = vmatprep.subr.mxu0 0.0
        %1329 = vmatpush1.msra.mxu0 0.0
        %1330 = vmatprep.subr.mxu0 0.0
        %1331 = vmatpush1.msra.mxu0 0.0
        %1332 = vmatprep.subr.mxu0 0.0
        %1333 = vmatpush1.msra.mxu0 0.0
        %1334 = vmatprep.subr.mxu0 0.0
        %1335 = vmatpush1.msra.mxu0 0.0
        %1336 = vmatprep.subr.mxu0 0.0
        %1337 = vmatpush1.msra.mxu0 0.0
        %1338 = vmatprep.subr.mxu0 0.0
        %1339 = vmatpush1.msra.mxu0 0.0
        %1340 = vmatprep.subr.mxu0 0.0
        %1341 = vmatpush1.msra.mxu0 0.0
        %1342 = vmatprep.subr.mxu0 0.0
        %1343 = vmatpush1.msra.mxu0 0.0
        %1344 = vmatprep.subr.mxu0 0.0
        %1345 = vmatpush1.msra.mxu0 0.0
        %1346 = vmatprep.subr.mxu0 0.0
        %1347 = vmatpush1.msra.mxu0 0.0
        %1348 = vmatprep.subr.mxu0 0.0
        %1349 = vmatpush1.msra.mxu0 0.0
        %1350 = vmatprep.mubr.f32.mxu0 0.0
        %1351 = vmatmul.mubr.f32.gmra.mrb[0].mxu0 %v1207
        %v1352 = vpop.f32.mrb[0].mxu0
        %v1353 = vadd.f32 0.0, %v1352
        %v1354 = vpop.f32.mrb[0].mxu0
        %1355 = vdwg.mxu0
        %v1356 = vadd.f32 %v1183, %v1282
        %v1357 = vadd.f32 %v1184, %v1284
        %v1358 = vadd.f32 %v1185, %v1353
        %s1359 = scalar_lea.vmem %s1, 56
        %v1360 = vld [vmem:[%s1359] sm:$0xff]
        %v1361 = vld [vmem:[%s168] sm:$0xff]
        %v1362 = vld [vmem:[%s168 + $0x8] sm:$0xff]
        %v1365 = vcombine.high %v1361, %v1361
        %v1366 = vcombine.high %v1362, %v1362
        %1367 = vrot.lane.b32.xlu0 %v1361, 91
        %v1368 = vpop.permute.xlu0 %1367
        %1369 = vrot.lane.b32.xlu0 %v1365, 91
        %v1370 = vpop.permute.xlu0 %1369
        %1371 = vrot.lane.b32.xlu0 %v1362, 91
        %v1372 = vpop.permute.xlu0 %1371
        %1373 = vrot.lane.b32.xlu0 %v1366, 91
        %v1374 = vpop.permute.xlu0 %1373
        %vm1375 = vcmask 744448
        %v1376 = vsel %vm1375, %v1368, %v1370
        %v1377 = vsel %vm1375, %v1370, %v1372
        %v1378 = vsel %vm1375, %v1372, %v1374
        %v1380 = vsel %vm191, %v1360, 0
        %v1382 = vsel %vm195, %v1376, 0
        %v1384 = vsel %vm195, %v1377, 0
        %v1386 = vsel %vm195, %v1378, 0
        %1388 = vmatprep.subr.mxu0 %v1384
        %1389 = vmatpush1.msra.mxu0 %v1382
        %1390 = vmatprep.subr.mxu0 0.0
        %1391 = vmatpush1.msra.mxu0 0.0
        %1392 = vmatprep.subr.mxu0 0.0
        %1393 = vmatpush1.msra.mxu0 0.0
        %1394 = vmatprep.subr.mxu0 0.0
        %1395 = vmatpush1.msra.mxu0 0.0
        %1396 = vmatprep.subr.mxu0 0.0
        %1397 = vmatpush1.msra.mxu0 0.0
        %1398 = vmatprep.subr.mxu0 0.0
        %1399 = vmatpush1.msra.mxu0 0.0
        %1400 = vmatprep.subr.mxu0 0.0
        %1401 = vmatpush1.msra.mxu0 0.0
        %1402 = vmatprep.subr.mxu0 0.0
        %1403 = vmatpush1.msra.mxu0 0.0
        %1404 = vmatprep.subr.mxu0 0.0
        %1405 = vmatpush1.msra.mxu0 0.0
        %1406 = vmatprep.subr.mxu0 0.0
        %1407 = vmatpush1.msra.mxu0 0.0
        %1408 = vmatprep.subr.mxu0 0.0
        %1409 = vmatpush1.msra.mxu0 0.0
        %1410 = vmatprep.subr.mxu0 0.0
        %1411 = vmatpush1.msra.mxu0 0.0
        %1412 = vmatprep.subr.mxu0 0.0
        %1413 = vmatpush1.msra.mxu0 0.0
        %1414 = vmatprep.subr.mxu0 0.0
        %1415 = vmatpush1.msra.mxu0 0.0
        %1416 = vmatprep.subr.mxu0 0.0
        %1417 = vmatpush1.msra.mxu0 0.0
        %1418 = vmatprep.subr.mxu0 0.0
        %1419 = vmatpush1.msra.mxu0 0.0
        %1420 = vmatprep.subr.mxu0 0.0
        %1421 = vmatpush1.msra.mxu0 0.0
        %1422 = vmatprep.subr.mxu0 0.0
        %1423 = vmatpush1.msra.mxu0 0.0
        %1424 = vmatprep.subr.mxu0 0.0
        %1425 = vmatpush1.msra.mxu0 0.0
        %1426 = vmatprep.subr.mxu0 0.0
        %1427 = vmatpush1.msra.mxu0 0.0
        %1428 = vmatprep.subr.mxu0 0.0
        %1429 = vmatpush1.msra.mxu0 0.0
        %1430 = vmatprep.subr.mxu0 0.0
        %1431 = vmatpush1.msra.mxu0 0.0
        %1432 = vmatprep.subr.mxu0 0.0
        %1433 = vmatpush1.msra.mxu0 0.0
        %1434 = vmatprep.subr.mxu0 0.0
        %1435 = vmatpush1.msra.mxu0 0.0
        %1436 = vmatprep.subr.mxu0 0.0
        %1437 = vmatpush1.msra.mxu0 0.0
        %1438 = vmatprep.subr.mxu0 0.0
        %1439 = vmatpush1.msra.mxu0 0.0
        %1440 = vmatprep.subr.mxu0 0.0
        %1441 = vmatpush1.msra.mxu0 0.0
        %1442 = vmatprep.subr.mxu0 0.0
        %1443 = vmatpush1.msra.mxu0 0.0
        %1444 = vmatprep.subr.mxu0 0.0
        %1445 = vmatpush1.msra.mxu0 0.0
        %1446 = vmatprep.subr.mxu0 0.0
        %1447 = vmatpush1.msra.mxu0 0.0
        %1448 = vmatprep.subr.mxu0 0.0
        %1449 = vmatpush1.msra.mxu0 0.0
        %1450 = vmatprep.subr.mxu0 0.0
        %1451 = vmatpush1.msra.mxu0 0.0
        %1452 = vmatprep.mubr.f32.mxu0 0.0
        %1453 = vmatmul.mubr.f32.gmra.mrb[0].mxu0 %v1380
        %v1454 = vpop.f32.mrb[0].mxu0
        %v1455 = vadd.f32 0.0, %v1454
        %v1456 = vpop.f32.mrb[0].mxu0
        %v1457 = vadd.f32 0.0, %v1456
        %1458 = vdwg.mxu0
        %1459 = vmatprep.subr.mxu0 0.0
        %1460 = vmatpush1.msra.mxu0 %v1386
        %1461 = vmatprep.subr.mxu0 0.0
        %1462 = vmatpush1.msra.mxu0 0.0
        %1463 = vmatprep.subr.mxu0 0.0
        %1464 = vmatpush1.msra.mxu0 0.0
        %1465 = vmatprep.subr.mxu0 0.0
        %1466 = vmatpush1.msra.mxu0 0.0
        %1467 = vmatprep.subr.mxu0 0.0
        %1468 = vmatpush1.msra.mxu0 0.0
        %1469 = vmatprep.subr.mxu0 0.0
        %1470 = vmatpush1.msra.mxu0 0.0
        %1471 = vmatprep.subr.mxu0 0.0
        %1472 = vmatpush1.msra.mxu0 0.0
        %1473 = vmatprep.subr.mxu0 0.0
        %1474 = vmatpush1.msra.mxu0 0.0
        %1475 = vmatprep.subr.mxu0 0.0
        %1476 = vmatpush1.msra.mxu0 0.0
        %1477 = vmatprep.subr.mxu0 0.0
        %1478 = vmatpush1.msra.mxu0 0.0
        %1479 = vmatprep.subr.mxu0 0.0
        %1480 = vmatpush1.msra.mxu0 0.0
        %1481 = vmatprep.subr.mxu0 0.0
        %1482 = vmatpush1.msra.mxu0 0.0
        %1483 = vmatprep.subr.mxu0 0.0
        %1484 = vmatpush1.msra.mxu0 0.0
        %1485 = vmatprep.subr.mxu0 0.0
        %1486 = vmatpush1.msra.mxu0 0.0
        %1487 = vmatprep.subr.mxu0 0.0
        %1488 = vmatpush1.msra.mxu0 0.0
        %1489 = vmatprep.subr.mxu0 0.0
        %1490 = vmatpush1.msra.mxu0 0.0
        %1491 = vmatprep.subr.mxu0 0.0
        %1492 = vmatpush1.msra.mxu0 0.0
        %1493 = vmatprep.subr.mxu0 0.0
        %1494 = vmatpush1.msra.mxu0 0.0
        %1495 = vmatprep.subr.mxu0 0.0
        %1496 = vmatpush1.msra.mxu0 0.0
        %1497 = vmatprep.subr.mxu0 0.0
        %1498 = vmatpush1.msra.mxu0 0.0
        %1499 = vmatprep.subr.mxu0 0.0
        %1500 = vmatpush1.msra.mxu0 0.0
        %1501 = vmatprep.subr.mxu0 0.0
        %1502 = vmatpush1.msra.mxu0 0.0
        %1503 = vmatprep.subr.mxu0 0.0
        %1504 = vmatpush1.msra.mxu0 0.0
        %1505 = vmatprep.subr.mxu0 0.0
        %1506 = vmatpush1.msra.mxu0 0.0
        %1507 = vmatprep.subr.mxu0 0.0
        %1508 = vmatpush1.msra.mxu0 0.0
        %1509 = vmatprep.subr.mxu0 0.0
        %1510 = vmatpush1.msra.mxu0 0.0
        %1511 = vmatprep.subr.mxu0 0.0
        %1512 = vmatpush1.msra.mxu0 0.0
        %1513 = vmatprep.subr.mxu0 0.0
        %1514 = vmatpush1.msra.mxu0 0.0
        %1515 = vmatprep.subr.mxu0 0.0
        %1516 = vmatpush1.msra.mxu0 0.0
        %1517 = vmatprep.subr.mxu0 0.0
        %1518 = vmatpush1.msra.mxu0 0.0
        %1519 = vmatprep.subr.mxu0 0.0
        %1520 = vmatpush1.msra.mxu0 0.0
        %1521 = vmatprep.subr.mxu0 0.0
        %1522 = vmatpush1.msra.mxu0 0.0
        %1523 = vmatprep.mubr.f32.mxu0 0.0
        %1524 = vmatmul.mubr.f32.gmra.mrb[0].mxu0 %v1380
        %v1525 = vpop.f32.mrb[0].mxu0
        %v1526 = vadd.f32 0.0, %v1525
        %v1527 = vpop.f32.mrb[0].mxu0
        %1528 = vdwg.mxu0
        %v1529 = vadd.f32 %v1356, %v1455
        %v1530 = vadd.f32 %v1357, %v1457
        %v1531 = vadd.f32 %v1358, %v1526
        %s1532 = scalar_lea.vmem %s1, 64
        %v1533 = vld [vmem:[%s1532] sm:$0xff]
        %v1534 = vld [vmem:[%s168] sm:$0xff]
        %v1535 = vld [vmem:[%s168 + $0x8] sm:$0xff]
        %v1538 = vcombine.high %v1534, %v1534
        %v1539 = vcombine.high %v1535, %v1535
        %1540 = vrot.lane.b32.xlu0 %v1534, 90
        %v1541 = vpop.permute.xlu0 %1540
        %1542 = vrot.lane.b32.xlu0 %v1538, 90
        %v1543 = vpop.permute.xlu0 %1542
        %1544 = vrot.lane.b32.xlu0 %v1535, 90
        %v1545 = vpop.permute.xlu0 %1544
        %1546 = vrot.lane.b32.xlu0 %v1539, 90
        %v1547 = vpop.permute.xlu0 %1546
        %vm1548 = vcmask 736256
        %v1549 = vsel %vm1548, %v1541, %v1543
        %v1550 = vsel %vm1548, %v1543, %v1545
        %v1551 = vsel %vm1548, %v1545, %v1547
        %v1553 = vsel %vm191, %v1533, 0
        %v1555 = vsel %vm195, %v1549, 0
        %v1557 = vsel %vm195, %v1550, 0
        %v1559 = vsel %vm195, %v1551, 0
        %1561 = vmatprep.subr.mxu0 %v1557
        %1562 = vmatpush1.msra.mxu0 %v1555
        %1563 = vmatprep.subr.mxu0 0.0
        %1564 = vmatpush1.msra.mxu0 0.0
        %1565 = vmatprep.subr.mxu0 0.0
        %1566 = vmatpush1.msra.mxu0 0.0
        %1567 = vmatprep.subr.mxu0 0.0
        %1568 = vmatpush1.msra.mxu0 0.0
        %1569 = vmatprep.subr.mxu0 0.0
        %1570 = vmatpush1.msra.mxu0 0.0
        %1571 = vmatprep.subr.mxu0 0.0
        %1572 = vmatpush1.msra.mxu0 0.0
        %1573 = vmatprep.subr.mxu0 0.0
        %1574 = vmatpush1.msra.mxu0 0.0
        %1575 = vmatprep.subr.mxu0 0.0
        %1576 = vmatpush1.msra.mxu0 0.0
        %1577 = vmatprep.subr.mxu0 0.0
        %1578 = vmatpush1.msra.mxu0 0.0
        %1579 = vmatprep.subr.mxu0 0.0
        %1580 = vmatpush1.msra.mxu0 0.0
        %1581 = vmatprep.subr.mxu0 0.0
        %1582 = vmatpush1.msra.mxu0 0.0
        %1583 = vmatprep.subr.mxu0 0.0
        %1584 = vmatpush1.msra.mxu0 0.0
        %1585 = vmatprep.subr.mxu0 0.0
        %1586 = vmatpush1.msra.mxu0 0.0
        %1587 = vmatprep.subr.mxu0 0.0
        %1588 = vmatpush1.msra.mxu0 0.0
        %1589 = vmatprep.subr.mxu0 0.0
        %1590 = vmatpush1.msra.mxu0 0.0
        %1591 = vmatprep.subr.mxu0 0.0
        %1592 = vmatpush1.msra.mxu0 0.0
        %1593 = vmatprep.subr.mxu0 0.0
        %1594 = vmatpush1.msra.mxu0 0.0
        %1595 = vmatprep.subr.mxu0 0.0
        %1596 = vmatpush1.msra.mxu0 0.0
        %1597 = vmatprep.subr.mxu0 0.0
        %1598 = vmatpush1.msra.mxu0 0.0
        %1599 = vmatprep.subr.mxu0 0.0
        %1600 = vmatpush1.msra.mxu0 0.0
        %1601 = vmatprep.subr.mxu0 0.0
        %1602 = vmatpush1.msra.mxu0 0.0
        %1603 = vmatprep.subr.mxu0 0.0
        %1604 = vmatpush1.msra.mxu0 0.0
        %1605 = vmatprep.subr.mxu0 0.0
        %1606 = vmatpush1.msra.mxu0 0.0
        %1607 = vmatprep.subr.mxu0 0.0
        %1608 = vmatpush1.msra.mxu0 0.0
        %1609 = vmatprep.subr.mxu0 0.0
        %1610 = vmatpush1.msra.mxu0 0.0
        %1611 = vmatprep.subr.mxu0 0.0
        %1612 = vmatpush1.msra.mxu0 0.0
        %1613 = vmatprep.subr.mxu0 0.0
        %1614 = vmatpush1.msra.mxu0 0.0
        %1615 = vmatprep.subr.mxu0 0.0
        %1616 = vmatpush1.msra.mxu0 0.0
        %1617 = vmatprep.subr.mxu0 0.0
        %1618 = vmatpush1.msra.mxu0 0.0
        %1619 = vmatprep.subr.mxu0 0.0
        %1620 = vmatpush1.msra.mxu0 0.0
        %1621 = vmatprep.subr.mxu0 0.0
        %1622 = vmatpush1.msra.mxu0 0.0
        %1623 = vmatprep.subr.mxu0 0.0
        %1624 = vmatpush1.msra.mxu0 0.0
        %1625 = vmatprep.mubr.f32.mxu0 0.0
        %1626 = vmatmul.mubr.f32.gmra.mrb[0].mxu0 %v1553
        %v1627 = vpop.f32.mrb[0].mxu0
        %v1628 = vadd.f32 0.0, %v1627
        %v1629 = vpop.f32.mrb[0].mxu0
        %v1630 = vadd.f32 0.0, %v1629
        %1631 = vdwg.mxu0
        %1632 = vmatprep.subr.mxu0 0.0
        %1633 = vmatpush1.msra.mxu0 %v1559
        %1634 = vmatprep.subr.mxu0 0.0
        %1635 = vmatpush1.msra.mxu0 0.0
        %1636 = vmatprep.subr.mxu0 0.0
        %1637 = vmatpush1.msra.mxu0 0.0
        %1638 = vmatprep.subr.mxu0 0.0
        %1639 = vmatpush1.msra.mxu0 0.0
        %1640 = vmatprep.subr.mxu0 0.0
        %1641 = vmatpush1.msra.mxu0 0.0
        %1642 = vmatprep.subr.mxu0 0.0
        %1643 = vmatpush1.msra.mxu0 0.0
        %1644 = vmatprep.subr.mxu0 0.0
        %1645 = vmatpush1.msra.mxu0 0.0
        %1646 = vmatprep.subr.mxu0 0.0
        %1647 = vmatpush1.msra.mxu0 0.0
        %1648 = vmatprep.subr.mxu0 0.0
        %1649 = vmatpush1.msra.mxu0 0.0
        %1650 = vmatprep.subr.mxu0 0.0
        %1651 = vmatpush1.msra.mxu0 0.0
        %1652 = vmatprep.subr.mxu0 0.0
        %1653 = vmatpush1.msra.mxu0 0.0
        %1654 = vmatprep.subr.mxu0 0.0
        %1655 = vmatpush1.msra.mxu0 0.0
        %1656 = vmatprep.subr.mxu0 0.0
        %1657 = vmatpush1.msra.mxu0 0.0
        %1658 = vmatprep.subr.mxu0 0.0
        %1659 = vmatpush1.msra.mxu0 0.0
        %1660 = vmatprep.subr.mxu0 0.0
        %1661 = vmatpush1.msra.mxu0 0.0
        %1662 = vmatprep.subr.mxu0 0.0
        %1663 = vmatpush1.msra.mxu0 0.0
        %1664 = vmatprep.subr.mxu0 0.0
        %1665 = vmatpush1.msra.mxu0 0.0
        %1666 = vmatprep.subr.mxu0 0.0
        %1667 = vmatpush1.msra.mxu0 0.0
        %1668 = vmatprep.subr.mxu0 0.0
        %1669 = vmatpush1.msra.mxu0 0.0
        %1670 = vmatprep.subr.mxu0 0.0
        %1671 = vmatpush1.msra.mxu0 0.0
        %1672 = vmatprep.subr.mxu0 0.0
        %1673 = vmatpush1.msra.mxu0 0.0
        %1674 = vmatprep.subr.mxu0 0.0
        %1675 = vmatpush1.msra.mxu0 0.0
        %1676 = vmatprep.subr.mxu0 0.0
        %1677 = vmatpush1.msra.mxu0 0.0
        %1678 = vmatprep.subr.mxu0 0.0
        %1679 = vmatpush1.msra.mxu0 0.0
        %1680 = vmatprep.subr.mxu0 0.0
        %1681 = vmatpush1.msra.mxu0 0.0
        %1682 = vmatprep.subr.mxu0 0.0
        %1683 = vmatpush1.msra.mxu0 0.0
        %1684 = vmatprep.subr.mxu0 0.0
        %1685 = vmatpush1.msra.mxu0 0.0
        %1686 = vmatprep.subr.mxu0 0.0
        %1687 = vmatpush1.msra.mxu0 0.0
        %1688 = vmatprep.subr.mxu0 0.0
        %1689 = vmatpush1.msra.mxu0 0.0
        %1690 = vmatprep.subr.mxu0 0.0
        %1691 = vmatpush1.msra.mxu0 0.0
        %1692 = vmatprep.subr.mxu0 0.0
        %1693 = vmatpush1.msra.mxu0 0.0
        %1694 = vmatprep.subr.mxu0 0.0
        %1695 = vmatpush1.msra.mxu0 0.0
        %1696 = vmatprep.mubr.f32.mxu0 0.0
        %1697 = vmatmul.mubr.f32.gmra.mrb[0].mxu0 %v1553
        %v1698 = vpop.f32.mrb[0].mxu0
        %v1699 = vadd.f32 0.0, %v1698
        %v1700 = vpop.f32.mrb[0].mxu0
        %1701 = vdwg.mxu0
        %v1702 = vadd.f32 %v1529, %v1628
        %v1703 = vadd.f32 %v1530, %v1630
        %v1704 = vadd.f32 %v1531, %v1699
        %v1705 = vld [vmem:[%s2] sm:$0xff]
        %1707 = vset.pattern.permute.xlu0 0
        %1708 = vperm.xlu0 %1707, %v1705
        %v1709 = vpop.permute.xlu0 %1708
        %v1711 = vadd.f32 %v1702, %v1709
        %v1712 = vadd.f32 %v1703, %v1709
        %v1713 = vadd.f32 %v1704, %v1709
        %v1714 = vmul.f32 %v1711, 0.5
        %v1715 = vmul.f32 %v1712, 0.5
        %v1716 = vmul.f32 %v1713, 0.5
        %v1717 = vtanh.pop %v1714
        %v1718 = vtanh.pop %v1715
        %v1719 = vtanh.pop %v1716
        %v1720 = vmul.f32 %v1717, 0.5
        %v1721 = vmul.f32 %v1718, 0.5
        %v1722 = vmul.f32 %v1719, 0.5
        %v1723 = vadd.f32 %v1720, 0.5
        %v1724 = vadd.f32 %v1721, 0.5
        %v1725 = vadd.f32 %v1722, 0.5
        %v1726 = vmul.f32 %v1711, %v1723
        %v1727 = vmul.f32 %v1712, %v1724
        %v1728 = vmul.f32 %v1713, %v1725
        %1729 = vst [vmem:[%s163] sm:$0xff] %v1726
        %1730 = vst [vmem:[%s163 + $0x8] sm:$0xff] %v1727
        %1731 = vst [vmem:[%s163 + $0x10] sm:$0xff] %v1728
        %s1732 = sand.u32 %s93, 1
        %s1733 = scalar_lea.sflag [#allocation3], %s1732
        %s1734 = sand.u32 %s93, 1
        %s1735 = smul.addr %s1734, 24
        %s1736 = scalar_lea.vmem [#allocation2], %s1735
        // Predicated region
        $region33: #{tpu_custom_call.1} parent=31 // pred_check
          %p1737 = pneg %p103
        $region34: #{tpu_custom_call.1} parent=31 // pred_check_branch
          %1739 = sbr.rel (%p1737) target = $region36
        $region35: #{tpu_custom_call.1} parent=31 // pred_region
          %s1741 = ssub.s32 384, 384
          %1742 = vsyncadd %s1733, %s1741
          %s1743 = smul.addr %s17, 3
          %s1744 = smul.addr %s1743, 128
          %s1745 = scalar_lea.hbm %s3, %s1744
          %s1747 = sshll.u32 %s1736, 4
          %s1748 = int_to_ptr.vmem [resolvable:$true] %s1747
          %1750 = dma.vmem_to_hbm [thread:$0]  %s1748, 384, %s1745, %s1733
        $region36: #{tpu_custom_call.1} parent=31 // pred_fallthru
          _
      $region32: #{tpu_custom_call.1} parent=5 // pred_fallthru
        _
      %p1751 = scmp.le.s32.totalorder 2, %s12
      // Predicated region
      $region37: #{tpu_custom_call.1} parent=5 // pred_check
        %p1752 = pneg %p1751
      $region38: #{tpu_custom_call.1} parent=5 // pred_check_branch
        %1754 = sbr.rel (%p1752) target = $region40
      $region39: #{tpu_custom_call.1} parent=5 // pred_region
        %s1755 = ssub.s32 %s12, 2
        // Predicated region
        $region41: #{tpu_custom_call.1} parent=39 // pred_check
          %p1756 = pneg %p109
        $region42: #{tpu_custom_call.1} parent=39 // pred_check_branch
          %1758 = sbr.rel (%p1756) target = $region44
        $region43: #{tpu_custom_call.1} parent=39 // pred_region
          %s1759 = sand.u32 %s94, 1
          %s1760 = scalar_lea.sflag [#allocation3], %s1759
          %s1761 = sand.u32 %s94, 1
          %s1762 = smul.addr %s1761, 24
          %s1763 = scalar_lea.vmem [#allocation2], %s1762
          %1764 = dma.done %s1760, 384
        $region44: #{tpu_custom_call.1} parent=39 // pred_fallthru
          _
      $region40: #{tpu_custom_call.1} parent=5 // pred_fallthru
        _
    $region6: #{tpu_custom_call.1} parent=1 // loop_footer
      %s16 = sadd.s32 1, %s12
    $region7: #{tpu_custom_call.1} parent=1 // loop_footer_branch
      %11 = sbr.rel target = $region3
    $region8: #{tpu_custom_call.1} parent=1 // loop_exit
      _
    %1765 = vsyncpa [#allocation3], 1
    %s1766 = scalar_lea.sflag [#allocation3], 1
    %1767 = vsyncpa %s1766, 1

</llo_original>
